<compile_context>
chip_gen: v7x
topology: tpu7x:2x2x1
jax: 0.10.0
libtpu: 0.0.40
codegen_flags: <defaults>
</compile_context>

<pallas_src>
import functools

import jax
import jax.numpy as jnp
from jax.experimental import pallas as pl
from jax.experimental.pallas import tpu as pltpu

_BN_EPS = 1e-5
_ACT = jnp.bfloat16      # activation / weight dtype fed to the MXU
_SLACK = 8               # extra zero rows at the end of the padded-flat layout
_VMEM_LIMIT = 32 * 1024 * 1024


# ---------------------------------------------------------------------------
# Pallas kernels
# ---------------------------------------------------------------------------
def _matmul_bias_relu_kernel(p_ref, w_ref, b_ref, o_ref):
    """conv1 (7x7/s2) as one im2col matmul per row tile: relu(P @ W + b)."""
    y = jnp.dot(p_ref[0], w_ref[...], preferred_element_type=jnp.float32)
    y = jnp.maximum(y + b_ref[...], 0.0)
    o_ref[0] = y.astype(o_ref.dtype)


def _maxpool_kernel(a_ref, b_ref, c_ref, d_ref, o_ref):
    """3x3/s2/p1 max-pool from the 4 stride phases of an even-sized image.

    a = x[2oh  , 2ow  ], b = x[2oh  , 2ow+1],
    c = x[2oh+1, 2ow  ], d = x[2oh+1, 2ow+1].
    Left / up neighbours are the shifted phases; at the padded edge the
    substitute value is always another in-window element, so the max is exact.
    """
    a = a_ref[0]
    b = b_ref[0]
    c = c_ref[0]
    d = d_ref[0]
    # column w-1 contributions (shift phases b, d right by one output column)
    b_l = jnp.concatenate([b[:, :1], b[:, :-1]], axis=1)
    d_l = jnp.concatenate([d[:, :1], d[:, :-1]], axis=1)
    m_mid = jnp.maximum(jnp.maximum(a, b), b_l)        # row 2oh
    m_bot = jnp.maximum(jnp.maximum(c, d), d_l)        # row 2oh+1
    m_top = jnp.concatenate([m_bot[:1], m_bot[:-1]], axis=0)   # row 2oh-1
    o_ref[0] = jnp.maximum(jnp.maximum(m_mid, m_bot), m_top)


def _basic_block_kernel(x_ref, w1_ref, b1_ref, w2_ref, b2_ref, o_ref, h_ref,
                        *, h, w, c):
    """Fused BasicBlock:  out = relu( bn2(conv2( relu(bn1(conv1(x))) )) + x ).

    x_ref / o_ref blocks are one image in the padded-flat layout
    ((h+2)*(w+2)+SLACK, c): padded row r, padded col q  ->  flat row r*(w+2)+q,
    halo / slack rows are zero.  For a 3x3 tap (i, j) the input slab over all
    output positions m = hh*(w+2)+ww  is simply  flat[m + i*(w+2) + j], i.e. a
    contiguous 2-D slice -- so the 9 tap slabs are concatenated along channels
    (K = 9c) and contracted in a single MXU dot per conv (M = h*(w+2)).
    The 2 "wrap" columns per row are masked to zero so they double as the
    zero-padding columns of the next conv / next block.
    """
    wp2 = w + 2
    m = h * wp2
    pf = (h + 2) * wp2 + _SLACK

    col = jax.lax.broadcasted_iota(jnp.int32, (m, 1), 0) % wp2
    valid = col < w                      # False on the 2 garbage columns / row

    def conv3x3(load, w_ref_, b_ref_, res=None):
        slabs = [load(i * wp2 + j) for i in range(3) for j in range(3)]
        lhs = jnp.concatenate(slabs, axis=-1)                    # (m, 9c)
        y = jnp.dot(lhs, w_ref_[...], preferred_element_type=jnp.float32)
        y = y + b_ref_[...]                                      # (1, c) bias
        if res is not None:
            y = y + res.astype(jnp.float32)
        y = jnp.maximum(y, 0.0)
        return jnp.where(valid, y, 0.0)

    # ---- conv1 of the block: read taps straight from the resident input ----
    load_x = lambda off: x_ref[0, pl.ds(off, m), :]
    h_val = conv3x3(load_x, w1_ref, b1_ref).astype(h_ref.dtype)   # (m, c)

    # ---- stash h into the padded VMEM scratch (halo rows zero) -------------
    h_ref[pl.ds(0, wp2 + 1), :] = jnp.zeros((wp2 + 1, c), h_ref.dtype)
    h_ref[pl.ds(wp2 + 1, m), :] = h_val
    tail0 = (h + 1) * wp2 + 1
    h_ref[pl.ds(tail0, pf - tail0), :] = jnp.zeros((pf - tail0, c), h_ref.dtype)

    # ---- conv2 of the block + residual + ReLU -------------------------------
    load_h = lambda off: h_ref[pl.ds(off, m), :]
    res = x_ref[0, pl.ds(wp2 + 1, m), :]
    y2 = conv3x3(load_h, w2_ref, b2_ref, res=res).astype(o_ref.dtype)

    # ---- write output in the same padded-flat layout ------------------------
    o_ref[0, pl.ds(0, wp2 + 1), :] = jnp.zeros((wp2 + 1, c), o_ref.dtype)
    o_ref[0, pl.ds(wp2 + 1, m), :] = y2
    o_ref[0, pl.ds(tail0, pf - tail0), :] = jnp.zeros((pf - tail0, c),
                                                      o_ref.dtype)


# ---------------------------------------------------------------------------
# Plain-JAX glue: BN folding, layouts, pallas_call wrappers
# ---------------------------------------------------------------------------
def _fold_bn(w_hwio, gamma, beta, mean, var):
    scale = gamma / jnp.sqrt(var + _BN_EPS)
    w_f = w_hwio * scale[None, None, None, :]
    bias = beta - mean * scale
    return w_f, bias


def _pick_tile(m, target):
    for t in range(min(m, target), 0, -1):
        if m % t == 0:
            return t
    return m


def conv7x7_s2_bn_relu(x_nhwc, w_hwio, bn):
    """Frontend conv1: 49 taps folded into K via im2col (cheap for Cin=3)."""
    kh, kw, cin, cout = w_hwio.shape
    stride, pad = 2, 3
    n, hin, win, _ = x_nhwc.shape
    ho = (hin + 2 * pad - kh) // stride + 1
    wo = (win + 2 * pad - kw) // stride + 1

    x = x_nhwc.astype(_ACT)
    xp = jnp.pad(x, ((0, 0), (pad, pad), (pad, pad), (0, 0)))
    slabs = [xp[:, i:i + stride * ho:stride, j:j + stride * wo:stride, :]
             for i in range(kh) for j in range(kw)]
    patches = jnp.concatenate(slabs, axis=-1)                 # (N, Ho, Wo, 147)
    k_real = kh * kw * cin
    k_pad = max(256, ((k_real + 127) // 128) * 128)
    patches = jnp.pad(patches, ((0, 0), (0, 0), (0, 0), (0, k_pad - k_real)))
    patches = patches.reshape(n, ho * wo, k_pad)

    w_f, bias = _fold_bn(w_hwio, *bn)
    w_mat = jnp.pad(w_f.reshape(k_real, cout),
                    ((0, k_pad - k_real), (0, 0))).astype(_ACT)
    bias = bias.reshape(1, cout).astype(jnp.float32)

    m_total = ho * wo
    mt = _pick_tile(m_total, 512)
    grid = (n, m_total // mt)

    out = pl.pallas_call(
        _matmul_bias_relu_kernel,
        out_shape=jax.ShapeDtypeStruct((n, m_total, cout), _ACT),
        grid=grid,
        in_specs=[pl.BlockSpec((1, mt, k_pad), lambda ni, mi: (ni, mi, 0)),
                  pl.BlockSpec((k_pad, cout), lambda ni, mi: (0, 0)),
                  pl.BlockSpec((1, cout), lambda ni, mi: (0, 0))],
        out_specs=pl.BlockSpec((1, mt, cout), lambda ni, mi: (ni, mi, 0)),
        compiler_params=pltpu.CompilerParams(
            dimension_semantics=("parallel", "arbitrary"),
            vmem_limit_bytes=_VMEM_LIMIT),
    )(patches, w_mat, bias)
    return out.reshape(n, ho, wo, cout)


def maxpool3x3_s2_p1(y_nhwc):
    n, ho, wo, c = y_nhwc.shape
    assert ho % 2 == 0 and wo % 2 == 0, "even spatial dims expected"
    hp, wp = ho // 2, wo // 2
    p00 = y_nhwc[:, 0::2, 0::2, :]
    p01 = y_nhwc[:, 0::2, 1::2, :]
    p10 = y_nhwc[:, 1::2, 0::2, :]
    p11 = y_nhwc[:, 1::2, 1::2, :]
    spec = pl.BlockSpec((1, hp, wp, c), lambda ni: (ni, 0, 0, 0))
    return pl.pallas_call(
        _maxpool_kernel,
        out_shape=jax.ShapeDtypeStruct((n, hp, wp, c), y_nhwc.dtype),
        grid=(n,),
        in_specs=[spec, spec, spec, spec],
        out_specs=spec,
        compiler_params=pltpu.CompilerParams(
            dimension_semantics=("parallel",),
            vmem_limit_bytes=_VMEM_LIMIT),
    )(p00, p01, p10, p11)


def _to_padded_flat(x_nhwc):
    n, h, w, c = x_nhwc.shape
    xp = jnp.pad(x_nhwc, ((0, 0), (1, 1), (1, 1), (0, 0)))
    flat = xp.reshape(n, (h + 2) * (w + 2), c)
    return jnp.pad(flat, ((0, 0), (0, _SLACK), (0, 0)))


def _from_padded_flat(flat, h, w):
    n, _, c = flat.shape
    xp = flat[:, :(h + 2) * (w + 2), :].reshape(n, h + 2, w + 2, c)
    return xp[:, 1:h + 1, 1:w + 1, :]


def basic_block(x_flat, h, w, prm):
    """Fused BasicBlock on padded-flat activations (consumes & produces it)."""
    n, pf, c = x_flat.shape
    w1, b1 = _fold_bn(prm["w1"], *prm["bn1"])
    w2, b2 = _fold_bn(prm["w2"], *prm["bn2"])
    w1 = w1.reshape(9 * c, c).astype(_ACT)
    w2 = w2.reshape(9 * c, c).astype(_ACT)
    b1 = b1.reshape(1, c).astype(jnp.float32)
    b2 = b2.reshape(1, c).astype(jnp.float32)

    kernel = functools.partial(_basic_block_kernel, h=h, w=w, c=c)
    return pl.pallas_call(
        kernel,
        out_shape=jax.ShapeDtypeStruct((n, pf, c), _ACT),
        grid=(n,),
        in_specs=[pl.BlockSpec((1, pf, c), lambda ni: (ni, 0, 0)),
                  pl.BlockSpec((9 * c, c), lambda ni: (0, 0)),
                  pl.BlockSpec((1, c), lambda ni: (0, 0)),
                  pl.BlockSpec((9 * c, c), lambda ni: (0, 0)),
                  pl.BlockSpec((1, c), lambda ni: (0, 0))],
        out_specs=pl.BlockSpec((1, pf, c), lambda ni: (ni, 0, 0)),
        scratch_shapes=[pltpu.VMEM((pf, c), _ACT)],
        compiler_params=pltpu.CompilerParams(
            dimension_semantics=("parallel",),
            vmem_limit_bytes=_VMEM_LIMIT),
    )(x_flat, w1, b1, w2, b2)


# ---------------------------------------------------------------------------
# Model assembly
# ---------------------------------------------------------------------------
def frontend_forward(x_nchw, params):
    x = jnp.transpose(x_nchw, (0, 2, 3, 1))                     # NCHW -> NHWC
    y = conv7x7_s2_bn_relu(x, params["conv1_w"], params["bn1"])
    p = maxpool3x3_s2_p1(y)                                     # (N,Hp,Wp,64)
    n, hp, wp, _ = p.shape
    xf = _to_padded_flat(p)          # padded-flat layout built once; blocks
    xf = basic_block(xf, hp, wp, params["block1"])  # pass it through directly
    xf = basic_block(xf, hp, wp, params["block2"])
    out = _from_padded_flat(xf, hp, wp)
    return jnp.transpose(out.astype(jnp.float32), (0, 3, 1, 2))  # back to NCHW


def dist_resnet_forward(x_nchw, params):
    feat = frontend_forward(x_nchw, params)
    # TODO(synk): rpc_sync to the backend shard is not representable; return
    # the frontend activation that would be sent over RPC.
    return feat


# ---------------------------------------------------------------------------
# Deterministic parameter initialization (shapes per the PyTorch __init__)
# ---------------------------------------------------------------------------
def _make_bn_params(key, c):
    k1, k2, k3, k4 = jax.random.split(key, 4)
    gamma = 1.0 + 0.1 * jax.random.normal(k1, (c,), jnp.float32)
    beta = 0.1 * jax.random.normal(k2, (c,), jnp.float32)
    mean = 0.05 * jax.random.normal(k3, (c,), jnp.float32)
    var = jax.random.uniform(k4, (c,), jnp.float32, 0.5, 1.5)
    return (gamma, beta, mean, var)


def _make_block_params(key, c):
    ks = jax.random.split(key, 4)
    return {
        "w1": 0.05 * jax.random.normal(ks[0], (3, 3, c, c), jnp.float32),
        "bn1": _make_bn_params(ks[1], c),
        "w2": 0.05 * jax.random.normal(ks[2], (3, 3, c, c), jnp.float32),
        "bn2": _make_bn_params(ks[3], c),
    }


def make_params(key):
    ks = jax.random.split(key, 4)
    return {
        "conv1_w": 0.05 * jax.random.normal(ks[0], (7, 7, 3, 64), jnp.float32),
        "bn1": _make_bn_params(ks[1], 64),
        "block1": _make_block_params(ks[2], 64),
        "block2": _make_block_params(ks[3], 64),
    }


if __name__ == "__main__":
    key = jax.random.PRNGKey(0)
    k_x, k_p = jax.random.split(key)
    # Small NCHW input consistent with the PyTorch module (Conv2d(3, 64, ...)).
    x = jax.random.normal(k_x, (2, 3, 16, 16), jnp.float32)
    params = make_params(k_p)

    fwd = jax.jit(dist_resnet_forward)
    out = jax.block_until_ready(fwd(x, params))

    assert out.shape == (2, 64, 4, 4), out.shape
    assert bool(jnp.all(jnp.isfinite(out)))
    assert bool(jnp.all(out >= 0.0))  # final op in every path is a ReLU
    print("KERNEL_OK")
</pallas_src>

<mosaic_0001>
module attributes {stable_mosaic.version = 11 : i64} {
  func.func @_matmul_bias_relu_kernel(%arg0: i32, %arg1: i32, %arg2: memref<1x64x256xbf16, #tpu.memory_space<vmem>>, %arg3: memref<256x64xbf16, #tpu.memory_space<vmem>>, %arg4: memref<1x64xf32, #tpu.memory_space<vmem>>, %arg5: memref<1x64x64xbf16, #tpu.memory_space<vmem>>) attributes {dimension_semantics = [#tpu.dimension_semantics<parallel>, #tpu.dimension_semantics<arbitrary>], iteration_bounds = array<i64: 2, 1>, scalar_prefetch = 0 : i64, scratch_operands = 0 : i64, tpu.core_type = #tpu.core_type<tc>, window_params = [{transform_indices = @transform_0, window_bounds = array<i64: 1, 64, 256>}, {pipeline_mode = #tpu.pipeline_mode<synchronous>, transform_indices = @transform_1, window_bounds = array<i64: 256, 64>}, {pipeline_mode = #tpu.pipeline_mode<synchronous>, transform_indices = @transform_2, window_bounds = array<i64: 1, 64>}, {transform_indices = @transform_3, window_bounds = array<i64: 1, 64, 64>}]} {
    %c0 = arith.constant 0 : index
    %c0_0 = arith.constant 0 : index
    %c0_1 = arith.constant 0 : index
    %0 = vector.load %arg2[%c0, %c0_0, %c0_1] : memref<1x64x256xbf16, #tpu.memory_space<vmem>>, vector<1x64x256xbf16>
    %1 = vector.shape_cast %0 : vector<1x64x256xbf16> to vector<64x256xbf16>
    %c0_2 = arith.constant 0 : index
    %c0_3 = arith.constant 0 : index
    %2 = vector.load %arg3[%c0_2, %c0_3] : memref<256x64xbf16, #tpu.memory_space<vmem>>, vector<256x64xbf16>
    %cst = arith.constant dense<0.000000e+00> : vector<64x64xf32>
    %3 = tpu.matmul %1, %2, %cst {dimension_numbers = #tpu.dot_dimension_numbers<[1], [0], [0], [1], [0, 0, 1, 1], [], []>} : vector<64x256xbf16>, vector<256x64xbf16>, vector<64x64xf32> -> vector<64x64xf32>
    %c0_4 = arith.constant 0 : index
    %c0_5 = arith.constant 0 : index
    %4 = vector.load %arg4[%c0_4, %c0_5] : memref<1x64xf32, #tpu.memory_space<vmem>>, vector<1x64xf32>
    %5 = vector.broadcast %4 : vector<1x64xf32> to vector<64x64xf32>
    %6 = arith.addf %3, %5 : vector<64x64xf32>
    %cst_6 = arith.constant 0.000000e+00 : f32
    %7 = vector.broadcast %cst_6 : f32 to vector<64x64xf32>
    %8 = arith.maximumf %6, %7 : vector<64x64xf32>
    %9 = arith.truncf %8 : vector<64x64xf32> to vector<64x64xbf16>
    %c0_7 = arith.constant 0 : index
    %c0_8 = arith.constant 0 : index
    %c0_9 = arith.constant 0 : index
    %10 = vector.load %arg5[%c0_7, %c0_8, %c0_9] : memref<1x64x64xbf16, #tpu.memory_space<vmem>>, vector<1x64x64xbf16>
    %11 = vector.shape_cast %10 : vector<1x64x64xbf16> to vector<64x64xbf16>
    %12 = vector.shape_cast %9 : vector<64x64xbf16> to vector<1x64x64xbf16>
    tpu.vector_store %arg5[%c0_7, %c0_8, %c0_9], %12 {strides = array<i32>} : memref<1x64x64xbf16, #tpu.memory_space<vmem>>, vector<1x64x64xbf16>,
    return
  }
  func.func @transform_0(%arg0: i32, %arg1: i32) -> (i32, i32, i32) {
    %c0_i32 = arith.constant 0 : i32
    %c0_i32_0 = arith.constant 0 : i32
    return %arg0, %arg1, %c0_i32 : i32, i32, i32
  }
  func.func @transform_1(%arg0: i32, %arg1: i32) -> (i32, i32) {
    %c0_i32 = arith.constant 0 : i32
    %c0_i32_0 = arith.constant 0 : i32
    %c0_i32_1 = arith.constant 0 : i32
    return %c0_i32, %c0_i32_0 : i32, i32
  }
  func.func @transform_2(%arg0: i32, %arg1: i32) -> (i32, i32) {
    %c0_i32 = arith.constant 0 : i32
    %c0_i32_0 = arith.constant 0 : i32
    %c0_i32_1 = arith.constant 0 : i32
    return %c0_i32, %c0_i32_0 : i32, i32
  }
  func.func @transform_3(%arg0: i32, %arg1: i32) -> (i32, i32, i32) {
    %c0_i32 = arith.constant 0 : i32
    %c0_i32_0 = arith.constant 0 : i32
    return %arg0, %arg1, %c0_i32 : i32, i32, i32
  }
}

module attributes {stable_mosaic.version = 11 : i64} {
  func.func @_maxpool_kernel(%arg0: i32, %arg1: memref<1x4x4x64xbf16, #tpu.memory_space<vmem>>, %arg2: memref<1x4x4x64xbf16, #tpu.memory_space<vmem>>, %arg3: memref<1x4x4x64xbf16, #tpu.memory_space<vmem>>, %arg4: memref<1x4x4x64xbf16, #tpu.memory_space<vmem>>, %arg5: memref<1x4x4x64xbf16, #tpu.memory_space<vmem>>) attributes {dimension_semantics = [#tpu.dimension_semantics<parallel>], iteration_bounds = array<i64: 2>, scalar_prefetch = 0 : i64, scratch_operands = 0 : i64, tpu.core_type = #tpu.core_type<tc>, window_params = [{transform_indices = @transform_0, window_bounds = array<i64: 1, 4, 4, 64>}, {transform_indices = @transform_1, window_bounds = array<i64: 1, 4, 4, 64>}, {transform_indices = @transform_2, window_bounds = array<i64: 1, 4, 4, 64>}, {transform_indices = @transform_3, window_bounds = array<i64: 1, 4, 4, 64>}, {transform_indices = @transform_4, window_bounds = array<i64: 1, 4, 4, 64>}]} {
    %c0 = arith.constant 0 : index
    %c0_0 = arith.constant 0 : index
    %c0_1 = arith.constant 0 : index
    %c0_2 = arith.constant 0 : index
    %0 = vector.load %arg1[%c0, %c0_0, %c0_1, %c0_2] : memref<1x4x4x64xbf16, #tpu.memory_space<vmem>>, vector<1x4x4x64xbf16>
    %1 = vector.shape_cast %0 : vector<1x4x4x64xbf16> to vector<4x4x64xbf16>
    %c0_3 = arith.constant 0 : index
    %c0_4 = arith.constant 0 : index
    %c0_5 = arith.constant 0 : index
    %c0_6 = arith.constant 0 : index
    %2 = vector.load %arg2[%c0_3, %c0_4, %c0_5, %c0_6] : memref<1x4x4x64xbf16, #tpu.memory_space<vmem>>, vector<1x4x4x64xbf16>
    %3 = vector.shape_cast %2 : vector<1x4x4x64xbf16> to vector<4x4x64xbf16>
    %c0_7 = arith.constant 0 : index
    %c0_8 = arith.constant 0 : index
    %c0_9 = arith.constant 0 : index
    %c0_10 = arith.constant 0 : index
    %4 = vector.load %arg3[%c0_7, %c0_8, %c0_9, %c0_10] : memref<1x4x4x64xbf16, #tpu.memory_space<vmem>>, vector<1x4x4x64xbf16>
    %5 = vector.shape_cast %4 : vector<1x4x4x64xbf16> to vector<4x4x64xbf16>
    %c0_11 = arith.constant 0 : index
    %c0_12 = arith.constant 0 : index
    %c0_13 = arith.constant 0 : index
    %c0_14 = arith.constant 0 : index
    %6 = vector.load %arg4[%c0_11, %c0_12, %c0_13, %c0_14] : memref<1x4x4x64xbf16, #tpu.memory_space<vmem>>, vector<1x4x4x64xbf16>
    %7 = vector.shape_cast %6 : vector<1x4x4x64xbf16> to vector<4x4x64xbf16>
    %8 = vector.extract_strided_slice %3 {offsets = [0, 0, 0], sizes = [4, 1, 64], strides = [1, 1, 1]} : vector<4x4x64xbf16> to vector<4x1x64xbf16>
    %9 = vector.extract_strided_slice %3 {offsets = [0, 0, 0], sizes = [4, 3, 64], strides = [1, 1, 1]} : vector<4x4x64xbf16> to vector<4x3x64xbf16>
    %10 = tpu.concatenate %8, %9 in 1 : vector<4x1x64xbf16>, vector<4x3x64xbf16> -> vector<4x4x64xbf16>
    %11 = vector.extract_strided_slice %7 {offsets = [0, 0, 0], sizes = [4, 1, 64], strides = [1, 1, 1]} : vector<4x4x64xbf16> to vector<4x1x64xbf16>
    %12 = vector.extract_strided_slice %7 {offsets = [0, 0, 0], sizes = [4, 3, 64], strides = [1, 1, 1]} : vector<4x4x64xbf16> to vector<4x3x64xbf16>
    %13 = tpu.concatenate %11, %12 in 1 : vector<4x1x64xbf16>, vector<4x3x64xbf16> -> vector<4x4x64xbf16>
    %14 = arith.maximumf %1, %3 : vector<4x4x64xbf16>
    %15 = arith.maximumf %14, %10 : vector<4x4x64xbf16>
    %16 = arith.maximumf %5, %7 : vector<4x4x64xbf16>
    %17 = arith.maximumf %16, %13 : vector<4x4x64xbf16>
    %18 = vector.extract_strided_slice %17 {offsets = [0, 0, 0], sizes = [1, 4, 64], strides = [1, 1, 1]} : vector<4x4x64xbf16> to vector<1x4x64xbf16>
    %19 = vector.extract_strided_slice %17 {offsets = [0, 0, 0], sizes = [3, 4, 64], strides = [1, 1, 1]} : vector<4x4x64xbf16> to vector<3x4x64xbf16>
    %20 = tpu.concatenate %18, %19 in 0 : vector<1x4x64xbf16>, vector<3x4x64xbf16> -> vector<4x4x64xbf16>
    %21 = arith.maximumf %15, %17 : vector<4x4x64xbf16>
    %22 = arith.maximumf %21, %20 : vector<4x4x64xbf16>
    %c0_15 = arith.constant 0 : index
    %c0_16 = arith.constant 0 : index
    %c0_17 = arith.constant 0 : index
    %c0_18 = arith.constant 0 : index
    %23 = vector.load %arg5[%c0_15, %c0_16, %c0_17, %c0_18] : memref<1x4x4x64xbf16, #tpu.memory_space<vmem>>, vector<1x4x4x64xbf16>
    %24 = vector.shape_cast %23 : vector<1x4x4x64xbf16> to vector<4x4x64xbf16>
    %25 = vector.shape_cast %22 : vector<4x4x64xbf16> to vector<1x4x4x64xbf16>
    tpu.vector_store %arg5[%c0_15, %c0_16, %c0_17, %c0_18], %25 {strides = array<i32>} : memref<1x4x4x64xbf16, #tpu.memory_space<vmem>>, vector<1x4x4x64xbf16>,
    return
  }
  func.func @transform_0(%arg0: i32) -> (i32, i32, i32, i32) {
    %c0_i32 = arith.constant 0 : i32
    %c0_i32_0 = arith.constant 0 : i32
    %c0_i32_1 = arith.constant 0 : i32
    %c0_i32_2 = arith.constant 0 : i32
    return %arg0, %c0_i32, %c0_i32_0, %c0_i32_1 : i32, i32, i32, i32
  }
  func.func @transform_1(%arg0: i32) -> (i32, i32, i32, i32) {
    %c0_i32 = arith.constant 0 : i32
    %c0_i32_0 = arith.constant 0 : i32
    %c0_i32_1 = arith.constant 0 : i32
    %c0_i32_2 = arith.constant 0 : i32
    return %arg0, %c0_i32, %c0_i32_0, %c0_i32_1 : i32, i32, i32, i32
  }
  func.func @transform_2(%arg0: i32) -> (i32, i32, i32, i32) {
    %c0_i32 = arith.constant 0 : i32
    %c0_i32_0 = arith.constant 0 : i32
    %c0_i32_1 = arith.constant 0 : i32
    %c0_i32_2 = arith.constant 0 : i32
    return %arg0, %c0_i32, %c0_i32_0, %c0_i32_1 : i32, i32, i32, i32
  }
  func.func @transform_3(%arg0: i32) -> (i32, i32, i32, i32) {
    %c0_i32 = arith.constant 0 : i32
    %c0_i32_0 = arith.constant 0 : i32
    %c0_i32_1 = arith.constant 0 : i32
    %c0_i32_2 = arith.constant 0 : i32
    return %arg0, %c0_i32, %c0_i32_0, %c0_i32_1 : i32, i32, i32, i32
  }
  func.func @transform_4(%arg0: i32) -> (i32, i32, i32, i32) {
    %c0_i32 = arith.constant 0 : i32
    %c0_i32_0 = arith.constant 0 : i32
    %c0_i32_1 = arith.constant 0 : i32
    %c0_i32_2 = arith.constant 0 : i32
    return %arg0, %c0_i32, %c0_i32_0, %c0_i32_1 : i32, i32, i32, i32
  }
}

module attributes {stable_mosaic.version = 11 : i64} {
  func.func @_basic_block_kernel(%arg0: i32, %arg1: memref<1x44x64xbf16, #tpu.memory_space<vmem>>, %arg2: memref<576x64xbf16, #tpu.memory_space<vmem>>, %arg3: memref<1x64xf32, #tpu.memory_space<vmem>>, %arg4: memref<576x64xbf16, #tpu.memory_space<vmem>>, %arg5: memref<1x64xf32, #tpu.memory_space<vmem>>, %arg6: memref<1x44x64xbf16, #tpu.memory_space<vmem>>, %arg7: memref<44x64xbf16, #tpu.memory_space<vmem>>) attributes {dimension_semantics = [#tpu.dimension_semantics<parallel>], iteration_bounds = array<i64: 2>, scalar_prefetch = 0 : i64, scratch_operands = 1 : i64, tpu.core_type = #tpu.core_type<tc>, window_params = [{transform_indices = @transform_0, window_bounds = array<i64: 1, 44, 64>}, {pipeline_mode = #tpu.pipeline_mode<synchronous>, transform_indices = @transform_1, window_bounds = array<i64: 576, 64>}, {pipeline_mode = #tpu.pipeline_mode<synchronous>, transform_indices = @transform_2, window_bounds = array<i64: 1, 64>}, {pipeline_mode = #tpu.pipeline_mode<synchronous>, transform_indices = @transform_3, window_bounds = array<i64: 576, 64>}, {pipeline_mode = #tpu.pipeline_mode<synchronous>, transform_indices = @transform_4, window_bounds = array<i64: 1, 64>}, {transform_indices = @transform_5, window_bounds = array<i64: 1, 44, 64>}]} {
    %0 = tpu.iota {dimensions = array<i32: 0>} : vector<24x1xi32>
    %c6_i32 = arith.constant 6 : i32
    %c0_i32 = arith.constant 0 : i32
    %1 = arith.cmpi eq, %c6_i32, %c0_i32 : i32
    %c1_i32 = arith.constant 1 : i32
    %2 = arith.select %1, %c1_i32, %c6_i32 : i32
    %3 = vector.broadcast %2 : i32 to vector<24x1xi32>
    %4 = arith.remsi %0, %3 : vector<24x1xi32>
    %c0_i32_0 = arith.constant 0 : i32
    %5 = vector.broadcast %c0_i32_0 : i32 to vector<24x1xi32>
    %6 = arith.cmpi ne, %4, %5 : vector<24x1xi32>
    %c0_i32_1 = arith.constant 0 : i32
    %7 = vector.broadcast %c0_i32_1 : i32 to vector<24x1xi32>
    %8 = arith.cmpi slt, %4, %7 : vector<24x1xi32>
    %c0_i32_2 = arith.constant 0 : i32
    %9 = arith.cmpi slt, %2, %c0_i32_2 : i32
    %10 = vector.broadcast %9 : i1 to vector<24x1xi1>
    %11 = vector.broadcast %10 : vector<24x1xi1> to vector<24x1xi1>
    %12 = arith.xori %8, %11 : vector<24x1xi1>
    %13 = arith.andi %12, %6 : vector<24x1xi1>
    %14 = vector.broadcast %2 : i32 to vector<24x1xi32>
    %15 = arith.addi %4, %14 : vector<24x1xi32>
    %16 = arith.select %13, %15, %4 : vector<24x1xi1>, vector<24x1xi32>
    %c4_i32 = arith.constant 4 : i32
    %17 = vector.broadcast %c4_i32 : i32 to vector<24x1xi32>
    %18 = arith.cmpi slt, %16, %17 : vector<24x1xi32>
    %c0 = arith.constant 0 : index
    %c0_3 = arith.constant 0 : index
    %c0_4 = arith.constant 0 : index
    %19 = vector.load %arg1[%c0, %c0_3, %c0_4] : memref<1x44x64xbf16, #tpu.memory_space<vmem>>, vector<1x24x64xbf16>
    %20 = vector.shape_cast %19 : vector<1x24x64xbf16> to vector<24x64xbf16>
    %c0_5 = arith.constant 0 : index
    %c1 = arith.constant 1 : index
    %c0_6 = arith.constant 0 : index
    %21 = vector.load %arg1[%c0_5, %c1, %c0_6] : memref<1x44x64xbf16, #tpu.memory_space<vmem>>, vector<1x24x64xbf16>
    %22 = vector.shape_cast %21 : vector<1x24x64xbf16> to vector<24x64xbf16>
    %c0_7 = arith.constant 0 : index
    %c2 = arith.constant 2 : index
    %c0_8 = arith.constant 0 : index
    %23 = vector.load %arg1[%c0_7, %c2, %c0_8] : memref<1x44x64xbf16, #tpu.memory_space<vmem>>, vector<1x24x64xbf16>
    %24 = vector.shape_cast %23 : vector<1x24x64xbf16> to vector<24x64xbf16>
    %c0_9 = arith.constant 0 : index
    %c6 = arith.constant 6 : index
    %c0_10 = arith.constant 0 : index
    %25 = vector.load %arg1[%c0_9, %c6, %c0_10] : memref<1x44x64xbf16, #tpu.memory_space<vmem>>, vector<1x24x64xbf16>
    %26 = vector.shape_cast %25 : vector<1x24x64xbf16> to vector<24x64xbf16>
    %c0_11 = arith.constant 0 : index
    %c7 = arith.constant 7 : index
    %c0_12 = arith.constant 0 : index
    %27 = vector.load %arg1[%c0_11, %c7, %c0_12] : memref<1x44x64xbf16, #tpu.memory_space<vmem>>, vector<1x24x64xbf16>
    %28 = vector.shape_cast %27 : vector<1x24x64xbf16> to vector<24x64xbf16>
    %c0_13 = arith.constant 0 : index
    %c8 = arith.constant 8 : index
    %c0_14 = arith.constant 0 : index
    %29 = vector.load %arg1[%c0_13, %c8, %c0_14] : memref<1x44x64xbf16, #tpu.memory_space<vmem>>, vector<1x24x64xbf16>
    %30 = vector.shape_cast %29 : vector<1x24x64xbf16> to vector<24x64xbf16>
    %c0_15 = arith.constant 0 : index
    %c12 = arith.constant 12 : index
    %c0_16 = arith.constant 0 : index
    %31 = vector.load %arg1[%c0_15, %c12, %c0_16] : memref<1x44x64xbf16, #tpu.memory_space<vmem>>, vector<1x24x64xbf16>
    %32 = vector.shape_cast %31 : vector<1x24x64xbf16> to vector<24x64xbf16>
    %c0_17 = arith.constant 0 : index
    %c13 = arith.constant 13 : index
    %c0_18 = arith.constant 0 : index
    %33 = vector.load %arg1[%c0_17, %c13, %c0_18] : memref<1x44x64xbf16, #tpu.memory_space<vmem>>, vector<1x24x64xbf16>
    %34 = vector.shape_cast %33 : vector<1x24x64xbf16> to vector<24x64xbf16>
    %c0_19 = arith.constant 0 : index
    %c14 = arith.constant 14 : index
    %c0_20 = arith.constant 0 : index
    %35 = vector.load %arg1[%c0_19, %c14, %c0_20] : memref<1x44x64xbf16, #tpu.memory_space<vmem>>, vector<1x24x64xbf16>
    %36 = vector.shape_cast %35 : vector<1x24x64xbf16> to vector<24x64xbf16>
    %37 = tpu.concatenate %20, %22, %24, %26, %28, %30, %32, %34, %36 in 1 : vector<24x64xbf16>, vector<24x64xbf16>, vector<24x64xbf16>, vector<24x64xbf16>, vector<24x64xbf16>, vector<24x64xbf16>, vector<24x64xbf16>, vector<24x64xbf16>, vector<24x64xbf16> -> vector<24x576xbf16>
    %c0_21 = arith.constant 0 : index
    %c0_22 = arith.constant 0 : index
    %38 = vector.load %arg2[%c0_21, %c0_22] : memref<576x64xbf16, #tpu.memory_space<vmem>>, vector<576x64xbf16>
    %cst = arith.constant dense<0.000000e+00> : vector<24x64xf32>
    %39 = tpu.matmul %37, %38, %cst {dimension_numbers = #tpu.dot_dimension_numbers<[1], [0], [0], [1], [0, 0, 1, 1], [], []>} : vector<24x576xbf16>, vector<576x64xbf16>, vector<24x64xf32> -> vector<24x64xf32>
    %c0_23 = arith.constant 0 : index
    %c0_24 = arith.constant 0 : index
    %40 = vector.load %arg3[%c0_23, %c0_24] : memref<1x64xf32, #tpu.memory_space<vmem>>, vector<1x64xf32>
    %41 = vector.broadcast %40 : vector<1x64xf32> to vector<24x64xf32>
    %42 = arith.addf %39, %41 : vector<24x64xf32>
    %cst_25 = arith.constant 0.000000e+00 : f32
    %43 = vector.broadcast %cst_25 : f32 to vector<24x64xf32>
    %44 = arith.maximumf %42, %43 : vector<24x64xf32>
    %cst_26 = arith.constant 0.000000e+00 : f32
    %45 = vector.shape_cast %18 : vector<24x1xi1> to vector<24x1xi1>
    %46 = vector.broadcast %45 : vector<24x1xi1> to vector<24x64xi1>
    %47 = vector.broadcast %cst_26 : f32 to vector<24x64xf32>
    %48 = arith.select %46, %44, %47 : vector<24x64xi1>, vector<24x64xf32>
    %49 = arith.truncf %48 : vector<24x64xf32> to vector<24x64xbf16>
    %cst_27 = arith.constant 0.000000e+00 : bf16
    %50 = vector.broadcast %cst_27 : bf16 to vector<7x64xbf16>
    %c0_28 = arith.constant 0 : index
    %c0_29 = arith.constant 0 : index
    %51 = vector.load %arg7[%c0_28, %c0_29] : memref<44x64xbf16, #tpu.memory_space<vmem>>, vector<7x64xbf16>
    tpu.vector_store %arg7[%c0_28, %c0_29], %50 {strides = array<i32>} : memref<44x64xbf16, #tpu.memory_space<vmem>>, vector<7x64xbf16>,
    %c7_30 = arith.constant 7 : index
    %c0_31 = arith.constant 0 : index
    %52 = vector.load %arg7[%c7_30, %c0_31] : memref<44x64xbf16, #tpu.memory_space<vmem>>, vector<24x64xbf16>
    tpu.vector_store %arg7[%c7_30, %c0_31], %49 {strides = array<i32>} : memref<44x64xbf16, #tpu.memory_space<vmem>>, vector<24x64xbf16>,
    %cst_32 = arith.constant 0.000000e+00 : bf16
    %53 = vector.broadcast %cst_32 : bf16 to vector<13x64xbf16>
    %c31 = arith.constant 31 : index
    %c0_33 = arith.constant 0 : index
    %54 = vector.load %arg7[%c31, %c0_33] : memref<44x64xbf16, #tpu.memory_space<vmem>>, vector<13x64xbf16>
    tpu.vector_store %arg7[%c31, %c0_33], %53 {strides = array<i32>} : memref<44x64xbf16, #tpu.memory_space<vmem>>, vector<13x64xbf16>,
    %c0_34 = arith.constant 0 : index
    %c7_35 = arith.constant 7 : index
    %c0_36 = arith.constant 0 : index
    %55 = vector.load %arg1[%c0_34, %c7_35, %c0_36] : memref<1x44x64xbf16, #tpu.memory_space<vmem>>, vector<1x24x64xbf16>
    %56 = vector.shape_cast %55 : vector<1x24x64xbf16> to vector<24x64xbf16>
    %c0_37 = arith.constant 0 : index
    %c0_38 = arith.constant 0 : index
    %57 = vector.load %arg7[%c0_37, %c0_38] : memref<44x64xbf16, #tpu.memory_space<vmem>>, vector<24x64xbf16>
    %c1_39 = arith.constant 1 : index
    %c0_40 = arith.constant 0 : index
    %58 = vector.load %arg7[%c1_39, %c0_40] : memref<44x64xbf16, #tpu.memory_space<vmem>>, vector<24x64xbf16>
    %c2_41 = arith.constant 2 : index
    %c0_42 = arith.constant 0 : index
    %59 = vector.load %arg7[%c2_41, %c0_42] : memref<44x64xbf16, #tpu.memory_space<vmem>>, vector<24x64xbf16>
    %c6_43 = arith.constant 6 : index
    %c0_44 = arith.constant 0 : index
    %60 = vector.load %arg7[%c6_43, %c0_44] : memref<44x64xbf16, #tpu.memory_space<vmem>>, vector<24x64xbf16>
    %c7_45 = arith.constant 7 : index
    %c0_46 = arith.constant 0 : index
    %61 = vector.load %arg7[%c7_45, %c0_46] : memref<44x64xbf16, #tpu.memory_space<vmem>>, vector<24x64xbf16>
    %c8_47 = arith.constant 8 : index
    %c0_48 = arith.constant 0 : index
    %62 = vector.load %arg7[%c8_47, %c0_48] : memref<44x64xbf16, #tpu.memory_space<vmem>>, vector<24x64xbf16>
    %c12_49 = arith.constant 12 : index
    %c0_50 = arith.constant 0 : index
    %63 = vector.load %arg7[%c12_49, %c0_50] : memref<44x64xbf16, #tpu.memory_space<vmem>>, vector<24x64xbf16>
    %c13_51 = arith.constant 13 : index
    %c0_52 = arith.constant 0 : index
    %64 = vector.load %arg7[%c13_51, %c0_52] : memref<44x64xbf16, #tpu.memory_space<vmem>>, vector<24x64xbf16>
    %c14_53 = arith.constant 14 : index
    %c0_54 = arith.constant 0 : index
    %65 = vector.load %arg7[%c14_53, %c0_54] : memref<44x64xbf16, #tpu.memory_space<vmem>>, vector<24x64xbf16>
    %66 = tpu.concatenate %57, %58, %59, %60, %61, %62, %63, %64, %65 in 1 : vector<24x64xbf16>, vector<24x64xbf16>, vector<24x64xbf16>, vector<24x64xbf16>, vector<24x64xbf16>, vector<24x64xbf16>, vector<24x64xbf16>, vector<24x64xbf16>, vector<24x64xbf16> -> vector<24x576xbf16>
    %c0_55 = arith.constant 0 : index
    %c0_56 = arith.constant 0 : index
    %67 = vector.load %arg4[%c0_55, %c0_56] : memref<576x64xbf16, #tpu.memory_space<vmem>>, vector<576x64xbf16>
    %cst_57 = arith.constant dense<0.000000e+00> : vector<24x64xf32>
    %68 = tpu.matmul %66, %67, %cst_57 {dimension_numbers = #tpu.dot_dimension_numbers<[1], [0], [0], [1], [0, 0, 1, 1], [], []>} : vector<24x576xbf16>, vector<576x64xbf16>, vector<24x64xf32> -> vector<24x64xf32>
    %c0_58 = arith.constant 0 : index
    %c0_59 = arith.constant 0 : index
    %69 = vector.load %arg5[%c0_58, %c0_59] : memref<1x64xf32, #tpu.memory_space<vmem>>, vector<1x64xf32>
    %70 = vector.broadcast %69 : vector<1x64xf32> to vector<24x64xf32>
    %71 = arith.addf %68, %70 : vector<24x64xf32>
    %72 = arith.extf %56 : vector<24x64xbf16> to vector<24x64xf32>
    %73 = arith.addf %71, %72 : vector<24x64xf32>
    %cst_60 = arith.constant 0.000000e+00 : f32
    %74 = vector.broadcast %cst_60 : f32 to vector<24x64xf32>
    %75 = arith.maximumf %73, %74 : vector<24x64xf32>
    %cst_61 = arith.constant 0.000000e+00 : f32
    %76 = vector.shape_cast %18 : vector<24x1xi1> to vector<24x1xi1>
    %77 = vector.broadcast %76 : vector<24x1xi1> to vector<24x64xi1>
    %78 = vector.broadcast %cst_61 : f32 to vector<24x64xf32>
    %79 = arith.select %77, %75, %78 : vector<24x64xi1>, vector<24x64xf32>
    %80 = arith.truncf %79 : vector<24x64xf32> to vector<24x64xbf16>
    %cst_62 = arith.constant 0.000000e+00 : bf16
    %81 = vector.broadcast %cst_62 : bf16 to vector<7x64xbf16>
    %c0_63 = arith.constant 0 : index
    %c0_64 = arith.constant 0 : index
    %c0_65 = arith.constant 0 : index
    %82 = vector.load %arg6[%c0_63, %c0_64, %c0_65] : memref<1x44x64xbf16, #tpu.memory_space<vmem>>, vector<1x7x64xbf16>
    %83 = vector.shape_cast %82 : vector<1x7x64xbf16> to vector<7x64xbf16>
    %84 = vector.shape_cast %81 : vector<7x64xbf16> to vector<1x7x64xbf16>
    tpu.vector_store %arg6[%c0_63, %c0_64, %c0_65], %84 {strides = array<i32>} : memref<1x44x64xbf16, #tpu.memory_space<vmem>>, vector<1x7x64xbf16>,
    %c0_66 = arith.constant 0 : index
    %c7_67 = arith.constant 7 : index
    %c0_68 = arith.constant 0 : index
    %85 = vector.load %arg6[%c0_66, %c7_67, %c0_68] : memref<1x44x64xbf16, #tpu.memory_space<vmem>>, vector<1x24x64xbf16>
    %86 = vector.shape_cast %85 : vector<1x24x64xbf16> to vector<24x64xbf16>
    %87 = vector.shape_cast %80 : vector<24x64xbf16> to vector<1x24x64xbf16>
    tpu.vector_store %arg6[%c0_66, %c7_67, %c0_68], %87 {strides = array<i32>} : memref<1x44x64xbf16, #tpu.memory_space<vmem>>, vector<1x24x64xbf16>,
    %cst_69 = arith.constant 0.000000e+00 : bf16
    %88 = vector.broadcast %cst_69 : bf16 to vector<13x64xbf16>
    %c0_70 = arith.constant 0 : index
    %c31_71 = arith.constant 31 : index
    %c0_72 = arith.constant 0 : index
    %89 = vector.load %arg6[%c0_70, %c31_71, %c0_72] : memref<1x44x64xbf16, #tpu.memory_space<vmem>>, vector<1x13x64xbf16>
    %90 = vector.shape_cast %89 : vector<1x13x64xbf16> to vector<13x64xbf16>
    %91 = vector.shape_cast %88 : vector<13x64xbf16> to vector<1x13x64xbf16>
    tpu.vector_store %arg6[%c0_70, %c31_71, %c0_72], %91 {strides = array<i32>} : memref<1x44x64xbf16, #tpu.memory_space<vmem>>, vector<1x13x64xbf16>,
    return
  }
  func.func @transform_0(%arg0: i32) -> (i32, i32, i32) {
    %c0_i32 = arith.constant 0 : i32
    %c0_i32_0 = arith.constant 0 : i32
    %c0_i32_1 = arith.constant 0 : i32
    return %arg0, %c0_i32, %c0_i32_0 : i32, i32, i32
  }
  func.func @transform_1(%arg0: i32) -> (i32, i32) {
    %c0_i32 = arith.constant 0 : i32
    %c0_i32_0 = arith.constant 0 : i32
    %c0_i32_1 = arith.constant 0 : i32
    return %c0_i32, %c0_i32_0 : i32, i32
  }
  func.func @transform_2(%arg0: i32) -> (i32, i32) {
    %c0_i32 = arith.constant 0 : i32
    %c0_i32_0 = arith.constant 0 : i32
    %c0_i32_1 = arith.constant 0 : i32
    return %c0_i32, %c0_i32_0 : i32, i32
  }
  func.func @transform_3(%arg0: i32) -> (i32, i32) {
    %c0_i32 = arith.constant 0 : i32
    %c0_i32_0 = arith.constant 0 : i32
    %c0_i32_1 = arith.constant 0 : i32
    return %c0_i32, %c0_i32_0 : i32, i32
  }
  func.func @transform_4(%arg0: i32) -> (i32, i32) {
    %c0_i32 = arith.constant 0 : i32
    %c0_i32_0 = arith.constant 0 : i32
    %c0_i32_1 = arith.constant 0 : i32
    return %c0_i32, %c0_i32_0 : i32, i32
  }
  func.func @transform_5(%arg0: i32) -> (i32, i32, i32) {
    %c0_i32 = arith.constant 0 : i32
    %c0_i32_0 = arith.constant 0 : i32
    %c0_i32_1 = arith.constant 0 : i32
    return %arg0, %c0_i32, %c0_i32_0 : i32, i32, i32
  }
}

</mosaic_0001>

<llo_original>
// kernel: dist_resnet_forward.5
$region0: #{dist_resnet_forward.5}
  #allocation0 [shape = 'u32[]', space=smem, size = 0x4, offset = 0x4, fixed_abs, tag = 'smem constant byte address 0x4 - core index']
  #allocation1 [shape = 'u32[144,128]{1,0:T(1,128)}', space=vmem, size = 0x12000, scoped, tag = 'internal scratch']
  %s0 = inlined_call_operand.vmem [shape: bf16[2,4,4,64], index: 0, kind: input, shape index: {}]
  %s1 = inlined_call_operand.vmem [shape: bf16[2,4,4,64], index: 1, kind: input, shape index: {}]
  %s2 = inlined_call_operand.vmem [shape: bf16[2,4,4,64], index: 2, kind: input, shape index: {}]
  %s3 = inlined_call_operand.vmem [shape: bf16[2,4,4,64], index: 3, kind: input, shape index: {}]
  %s4 = inlined_call_operand.vmem [shape: bf16[2,4,4,64], index: 4, kind: output, shape index: {}]
  %s5 = sld [smem:[#allocation0]]
  $region49: #{dist_resnet_forward.5} parent=0
    _
  %s7 = ssub.s32 1, %s5
  %s8 = scalar_select 0, %s7, %s5
  loop: start=0, step=1, limit=4
  $region2: #{dist_resnet_forward.5} parent=0 // loop_pre_header
    _
  $region3: #{dist_resnet_forward.5} parent=0 // loop_header
    %s10 = sphi 0, %s14
    %p11 = scmp.ge.s32.totalorder %s10, 4
    %s20 = sphi 0, %s22
    %s23 = sphi 0, %s20
    %s24 = sphi 0, %s23
    %s40 = sphi 0, %s24
    %s46 = sphi 0, %s48
    %s49 = sphi 0, %s46
    %s50 = sphi 0, %s49
    %s66 = sphi 0, %s50
    %s72 = sphi 0, %s74
    %s75 = sphi 0, %s72
    %s76 = sphi 0, %s75
    %s92 = sphi 0, %s76
    %s98 = sphi 0, %s100
    %s101 = sphi 0, %s98
    %s102 = sphi 0, %s101
    %s118 = sphi 0, %s102
    %s124 = sphi 0, %s126
    %s127 = sphi 0, %s124
    %s128 = sphi 0, %s127
    %s144 = sphi 0, %s128
  $region4: #{dist_resnet_forward.5} parent=0 // loop_header_branch
    %13 = sbr.rel (%p11) target = $region8
  $region5: #{dist_resnet_forward.5} parent=0 // loop_body
    %s15 = ssub.s32 %s10, 1
    %s16 = ssub.s32 %s10, 2
    %s17 = sadd.s32 %s10, 1
    %s18 = ssub.s32 %s10, %s17
    %p19 = scmp.eq.s32.totalorder %s18, 0
    %s21 = sadd.s32 %s20, 1
    %s22 = scalar_select %p19, %s20, %s21
    %p25 = pneg %p19
    %p26 = scmp.eq.s32.totalorder %s10, 1
    %p27 = por %p25, %p26
    %p28 = scmp.ne.s32.totalorder %s20, %s23
    %p29 = scmp.eq.s32.totalorder %s10, 0
    %p30 = por %p28, %p29
    %p31 = scmp.ne.s32.totalorder %s20, %s23
    %p32 = scmp.eq.s32.totalorder %s15, 1
    %p33 = por %p31, %p32
    %p34 = scmp.ne.s32.totalorder %s23, %s24
    %p35 = scmp.eq.s32.totalorder %s15, 0
    %p36 = por %p34, %p35
    %p37 = scmp.ne.s32.totalorder %s23, %s24
    %p38 = scmp.eq.s32.totalorder %s16, 1
    %p39 = por %p37, %p38
    %p41 = scmp.ne.s32.totalorder %s24, %s40
    %p42 = scmp.eq.s32.totalorder %s16, 0
    %p43 = por %p41, %p42
    %s44 = ssub.s32 %s10, %s17
    %p45 = scmp.eq.s32.totalorder %s44, 0
    %s47 = sadd.s32 %s46, 1
    %s48 = scalar_select %p45, %s46, %s47
    %p51 = pneg %p45
    %p52 = scmp.eq.s32.totalorder %s10, 1
    %p53 = por %p51, %p52
    %p54 = scmp.ne.s32.totalorder %s46, %s49
    %p55 = scmp.eq.s32.totalorder %s10, 0
    %p56 = por %p54, %p55
    %p57 = scmp.ne.s32.totalorder %s46, %s49
    %p58 = scmp.eq.s32.totalorder %s15, 1
    %p59 = por %p57, %p58
    %p60 = scmp.ne.s32.totalorder %s49, %s50
    %p61 = scmp.eq.s32.totalorder %s15, 0
    %p62 = por %p60, %p61
    %p63 = scmp.ne.s32.totalorder %s49, %s50
    %p64 = scmp.eq.s32.totalorder %s16, 1
    %p65 = por %p63, %p64
    %p67 = scmp.ne.s32.totalorder %s50, %s66
    %p68 = scmp.eq.s32.totalorder %s16, 0
    %p69 = por %p67, %p68
    %s70 = ssub.s32 %s10, %s17
    %p71 = scmp.eq.s32.totalorder %s70, 0
    %s73 = sadd.s32 %s72, 1
    %s74 = scalar_select %p71, %s72, %s73
    %p77 = pneg %p71
    %p78 = scmp.eq.s32.totalorder %s10, 1
    %p79 = por %p77, %p78
    %p80 = scmp.ne.s32.totalorder %s72, %s75
    %p81 = scmp.eq.s32.totalorder %s10, 0
    %p82 = por %p80, %p81
    %p83 = scmp.ne.s32.totalorder %s72, %s75
    %p84 = scmp.eq.s32.totalorder %s15, 1
    %p85 = por %p83, %p84
    %p86 = scmp.ne.s32.totalorder %s75, %s76
    %p87 = scmp.eq.s32.totalorder %s15, 0
    %p88 = por %p86, %p87
    %p89 = scmp.ne.s32.totalorder %s75, %s76
    %p90 = scmp.eq.s32.totalorder %s16, 1
    %p91 = por %p89, %p90
    %p93 = scmp.ne.s32.totalorder %s76, %s92
    %p94 = scmp.eq.s32.totalorder %s16, 0
    %p95 = por %p93, %p94
    %s96 = ssub.s32 %s10, %s17
    %p97 = scmp.eq.s32.totalorder %s96, 0
    %s99 = sadd.s32 %s98, 1
    %s100 = scalar_select %p97, %s98, %s99
    %p103 = pneg %p97
    %p104 = scmp.eq.s32.totalorder %s10, 1
    %p105 = por %p103, %p104
    %p106 = scmp.ne.s32.totalorder %s98, %s101
    %p107 = scmp.eq.s32.totalorder %s10, 0
    %p108 = por %p106, %p107
    %p109 = scmp.ne.s32.totalorder %s98, %s101
    %p110 = scmp.eq.s32.totalorder %s15, 1
    %p111 = por %p109, %p110
    %p112 = scmp.ne.s32.totalorder %s101, %s102
    %p113 = scmp.eq.s32.totalorder %s15, 0
    %p114 = por %p112, %p113
    %p115 = scmp.ne.s32.totalorder %s101, %s102
    %p116 = scmp.eq.s32.totalorder %s16, 1
    %p117 = por %p115, %p116
    %p119 = scmp.ne.s32.totalorder %s102, %s118
    %p120 = scmp.eq.s32.totalorder %s16, 0
    %p121 = por %p119, %p120
    %s122 = ssub.s32 %s10, %s17
    %p123 = scmp.eq.s32.totalorder %s122, 0
    %s125 = sadd.s32 %s124, 1
    %s126 = scalar_select %p123, %s124, %s125
    %p129 = pneg %p123
    %p130 = scmp.eq.s32.totalorder %s10, 1
    %p131 = por %p129, %p130
    %p132 = scmp.ne.s32.totalorder %s124, %s127
    %p133 = scmp.eq.s32.totalorder %s10, 0
    %p134 = por %p132, %p133
    %p135 = scmp.ne.s32.totalorder %s124, %s127
    %p136 = scmp.eq.s32.totalorder %s15, 1
    %p137 = por %p135, %p136
    %p138 = scmp.ne.s32.totalorder %s127, %s128
    %p139 = scmp.eq.s32.totalorder %s15, 0
    %p140 = por %p138, %p139
    %p141 = scmp.ne.s32.totalorder %s127, %s128
    %p142 = scmp.eq.s32.totalorder %s16, 1
    %p143 = por %p141, %p142
    %p145 = scmp.ne.s32.totalorder %s128, %s144
    %p146 = scmp.eq.s32.totalorder %s16, 0
    %p147 = por %p145, %p146
    %p148 = scmp.le.s32.totalorder 1, %s10
    %p149 = scmp.lt.s32.totalorder %s10, 3
    %p150 = pnand %p148, %p149
    %p151 = pneg %p150
    // Predicated region
    $region9: #{dist_resnet_forward.5} parent=5 // pred_check
      _
    $region10: #{dist_resnet_forward.5} parent=5 // pred_check_branch
      %153 = sbr.rel (%p150) target = $region12
    $region11: #{dist_resnet_forward.5} parent=5 // pred_region
      %s154 = ssub.s32 %s10, 1
    $region12: #{dist_resnet_forward.5} parent=5 // pred_fallthru
      _
    %p155 = scmp.lt.s32.totalorder %s10, 2
    // Predicated region
    $region13: #{dist_resnet_forward.5} parent=5 // pred_check
      %p156 = pneg %p155
    $region14: #{dist_resnet_forward.5} parent=5 // pred_check_branch
      %158 = sbr.rel (%p156) target = $region16
    $region15: #{dist_resnet_forward.5} parent=5 // pred_region
      // Predicated region
      $region17: #{dist_resnet_forward.5} parent=15 // pred_check
        %p159 = pneg %p30
      $region18: #{dist_resnet_forward.5} parent=15 // pred_check_branch
        %161 = sbr.rel (%p159) target = $region20
      $region19: #{dist_resnet_forward.5} parent=15 // pred_region
        %p162 = scmp.lt.s32.totalorder %s10, 1
        %s163 = scalar_select %p162, %s10, 1
        %s164 = smul.addr %s163, 4
        %s165 = smul.addr %s164, 2
        %s166 = scalar_lea.vmem %s0, %s165
      $region20: #{dist_resnet_forward.5} parent=15 // pred_fallthru
        _
      // Predicated region
      $region21: #{dist_resnet_forward.5} parent=15 // pred_check
        %p167 = pneg %p56
      $region22: #{dist_resnet_forward.5} parent=15 // pred_check_branch
        %169 = sbr.rel (%p167) target = $region24
      $region23: #{dist_resnet_forward.5} parent=15 // pred_region
        %p170 = scmp.lt.s32.totalorder %s10, 1
        %s171 = scalar_select %p170, %s10, 1
        %s172 = smul.addr %s171, 4
        %s173 = smul.addr %s172, 2
        %s174 = scalar_lea.vmem %s1, %s173
      $region24: #{dist_resnet_forward.5} parent=15 // pred_fallthru
        _
      // Predicated region
      $region25: #{dist_resnet_forward.5} parent=15 // pred_check
        %p175 = pneg %p82
      $region26: #{dist_resnet_forward.5} parent=15 // pred_check_branch
        %177 = sbr.rel (%p175) target = $region28
      $region27: #{dist_resnet_forward.5} parent=15 // pred_region
        %p178 = scmp.lt.s32.totalorder %s10, 1
        %s179 = scalar_select %p178, %s10, 1
        %s180 = smul.addr %s179, 4
        %s181 = smul.addr %s180, 2
        %s182 = scalar_lea.vmem %s2, %s181
      $region28: #{dist_resnet_forward.5} parent=15 // pred_fallthru
        _
      // Predicated region
      $region29: #{dist_resnet_forward.5} parent=15 // pred_check
        %p183 = pneg %p108
      $region30: #{dist_resnet_forward.5} parent=15 // pred_check_branch
        %185 = sbr.rel (%p183) target = $region32
      $region31: #{dist_resnet_forward.5} parent=15 // pred_region
        %p186 = scmp.lt.s32.totalorder %s10, 1
        %s187 = scalar_select %p186, %s10, 1
        %s188 = smul.addr %s187, 4
        %s189 = smul.addr %s188, 2
        %s190 = scalar_lea.vmem %s3, %s189
      $region32: #{dist_resnet_forward.5} parent=15 // pred_fallthru
        _
    $region16: #{dist_resnet_forward.5} parent=5 // pred_fallthru
      _
    %p191 = scmp.le.s32.totalorder 1, %s10
    %p192 = scmp.lt.s32.totalorder %s10, 3
    %p193 = pnand %p191, %p192
    %p194 = pneg %p193
    // Predicated region
    $region33: #{dist_resnet_forward.5} parent=5 // pred_check
      _
    $region34: #{dist_resnet_forward.5} parent=5 // pred_check_branch
      %196 = sbr.rel (%p193) target = $region36
    $region35: #{dist_resnet_forward.5} parent=5 // pred_region
      %s197 = ssub.s32 %s10, 1
      %p198 = scmp.lt.s32.totalorder %s15, 1
      %s199 = scalar_select %p198, %s15, 1
      %s200 = smul.addr %s199, 4
      %s201 = smul.addr %s200, 2
      %s202 = scalar_lea.vmem %s0, %s201
      %p203 = pneg %p36
      %p204 = pneg %p33
      %p205 = scmp.lt.s32.totalorder %s15, 1
      %s206 = scalar_select %p205, %s15, 1
      %s207 = smul.addr %s206, 4
      %s208 = smul.addr %s207, 2
      %s209 = scalar_lea.vmem %s1, %s208
      %p210 = pneg %p62
      %p211 = pneg %p59
      %p212 = scmp.lt.s32.totalorder %s15, 1
      %s213 = scalar_select %p212, %s15, 1
      %s214 = smul.addr %s213, 4
      %s215 = smul.addr %s214, 2
      %s216 = scalar_lea.vmem %s2, %s215
      %p217 = pneg %p88
      %p218 = pneg %p85
      %p219 = scmp.lt.s32.totalorder %s15, 1
      %s220 = scalar_select %p219, %s15, 1
      %s221 = smul.addr %s220, 4
      %s222 = smul.addr %s221, 2
      %s223 = scalar_lea.vmem %s3, %s222
      %p224 = pneg %p114
      %p225 = pneg %p111
      %p226 = pneg %p140
      %p227 = pneg %p137
      %p228 = scmp.lt.s32.totalorder %s15, 1
      %s229 = scalar_select %p228, %s15, 1
      %s230 = smul.addr %s229, 4
      %s231 = smul.addr %s230, 2
      %s232 = scalar_lea.vmem %s4, %s231
      %p233 = scmp.lt.s32.totalorder %s15, 1
      %s234 = scalar_select %p233, %s15, 1
      %s235 = smul.addr %s234, 4
      %s236 = smul.addr %s235, 2
      %s237 = scalar_lea.vmem %s0, %s236
      %p238 = scmp.lt.s32.totalorder %s15, 1
      %s239 = scalar_select %p238, %s15, 1
      %s240 = smul.addr %s239, 4
      %s241 = smul.addr %s240, 2
      %s242 = scalar_lea.vmem %s1, %s241
      %p243 = scmp.lt.s32.totalorder %s15, 1
      %s244 = scalar_select %p243, %s15, 1
      %s245 = smul.addr %s244, 4
      %s246 = smul.addr %s245, 2
      %s247 = scalar_lea.vmem %s2, %s246
      %p248 = scmp.lt.s32.totalorder %s15, 1
      %s249 = scalar_select %p248, %s15, 1
      %s250 = smul.addr %s249, 4
      %s251 = smul.addr %s250, 2
      %s252 = scalar_lea.vmem %s3, %s251
      %p253 = scmp.lt.s32.totalorder %s15, 1
      %s254 = scalar_select %p253, %s15, 1
      %s255 = smul.addr %s254, 4
      %s256 = smul.addr %s255, 2
      %s257 = scalar_lea.vmem %s4, %s256
      %v258 = vld [vmem:[%s237] sm:$0x3]
      %v259 = vld [vmem:[%s237 + $0x2] sm:$0x3]
      %v260 = vld [vmem:[%s237 + $0x4] sm:$0x3]
      %v261 = vld [vmem:[%s237 + $0x6] sm:$0x3]
      %v262 = vld [vmem:[%s242] sm:$0x3]
      %v263 = vld [vmem:[%s242 + $0x2] sm:$0x3]
      %v264 = vld [vmem:[%s242 + $0x4] sm:$0x3]
      %v265 = vld [vmem:[%s242 + $0x6] sm:$0x3]
      %v266 = vld [vmem:[%s247] sm:$0x3]
      %v267 = vld [vmem:[%s247 + $0x2] sm:$0x3]
      %v268 = vld [vmem:[%s247 + $0x4] sm:$0x3]
      %v269 = vld [vmem:[%s247 + $0x6] sm:$0x3]
      %v270 = vld [vmem:[%s252] sm:$0x3]
      %v271 = vld [vmem:[%s252 + $0x2] sm:$0x3]
      %v272 = vld [vmem:[%s252 + $0x4] sm:$0x3]
      %v273 = vld [vmem:[%s252 + $0x6] sm:$0x3]
      %v279 = vunpack.c.l.s4 1983009808
      %v280 = vunpack.c.0.s8 %v279
      %v281 = vlaneseq
      %v282 = vshrl.u32 %v281, 7
      %v283 = vsub.s32 %v280, %v282
      %v284 = vrot.slane %v262, %v283
      %v286 = vunpack.c.l.s4 1983009808
      %v287 = vunpack.c.0.s8 %v286
      %v288 = vlaneseq
      %v289 = vshrl.u32 %v288, 7
      %v290 = vsub.s32 %v287, %v289
      %v291 = vrot.slane %v263, %v290
      %v293 = vunpack.c.l.s4 1983009808
      %v294 = vunpack.c.0.s8 %v293
      %v295 = vlaneseq
      %v296 = vshrl.u32 %v295, 7
      %v297 = vsub.s32 %v294, %v296
      %v298 = vrot.slane %v264, %v297
      %v300 = vunpack.c.l.s4 1983009808
      %v301 = vunpack.c.0.s8 %v300
      %v302 = vlaneseq
      %v303 = vshrl.u32 %v302, 7
      %v304 = vsub.s32 %v301, %v303
      %v305 = vrot.slane %v265, %v304
      %v307 = vshrl.u32 %v284, 16
      %v309 = vrot.slane %v307, 7
      %v310 = vshll.u32 %v284, 16
      %v312 = vor.u32 %v309, %v310
      %v314 = vshrl.u32 %v291, 16
      %v316 = vrot.slane %v314, 7
      %v317 = vshll.u32 %v291, 16
      %v319 = vor.u32 %v316, %v317
      %v321 = vshrl.u32 %v298, 16
      %v323 = vrot.slane %v321, 7
      %v324 = vshll.u32 %v298, 16
      %v326 = vor.u32 %v323, %v324
      %v328 = vshrl.u32 %v305, 16
      %v330 = vrot.slane %v328, 7
      %v331 = vshll.u32 %v305, 16
      %v333 = vor.u32 %v330, %v331
      %vm338 = vcmask 1040384
      %vm339 = vsmask.f32 256
      %vm340 = vmand %vm338, %vm339
      %v341 = vsel %vm340, %v262, %v312
      %v342 = vsel %vm340, %v263, %v319
      %v343 = vsel %vm340, %v264, %v326
      %v344 = vsel %vm340, %v265, %v333
      %v350 = vunpack.c.l.s4 1983009808
      %v351 = vunpack.c.0.s8 %v350
      %v352 = vlaneseq
      %v353 = vshrl.u32 %v352, 7
      %v354 = vsub.s32 %v351, %v353
      %v355 = vrot.slane %v270, %v354
      %v357 = vunpack.c.l.s4 1983009808
      %v358 = vunpack.c.0.s8 %v357
      %v359 = vlaneseq
      %v360 = vshrl.u32 %v359, 7
      %v361 = vsub.s32 %v358, %v360
      %v362 = vrot.slane %v271, %v361
      %v364 = vunpack.c.l.s4 1983009808
      %v365 = vunpack.c.0.s8 %v364
      %v366 = vlaneseq
      %v367 = vshrl.u32 %v366, 7
      %v368 = vsub.s32 %v365, %v367
      %v369 = vrot.slane %v272, %v368
      %v371 = vunpack.c.l.s4 1983009808
      %v372 = vunpack.c.0.s8 %v371
      %v373 = vlaneseq
      %v374 = vshrl.u32 %v373, 7
      %v375 = vsub.s32 %v372, %v374
      %v376 = vrot.slane %v273, %v375
      %v378 = vshrl.u32 %v355, 16
      %v380 = vrot.slane %v378, 7
      %v381 = vshll.u32 %v355, 16
      %v383 = vor.u32 %v380, %v381
      %v385 = vshrl.u32 %v362, 16
      %v387 = vrot.slane %v385, 7
      %v388 = vshll.u32 %v362, 16
      %v390 = vor.u32 %v387, %v388
      %v392 = vshrl.u32 %v369, 16
      %v394 = vrot.slane %v392, 7
      %v395 = vshll.u32 %v369, 16
      %v397 = vor.u32 %v394, %v395
      %v399 = vshrl.u32 %v376, 16
      %v401 = vrot.slane %v399, 7
      %v402 = vshll.u32 %v376, 16
      %v404 = vor.u32 %v401, %v402
      %v409 = vsel %vm340, %v270, %v383
      %v410 = vsel %vm340, %v271, %v390
      %v411 = vsel %vm340, %v272, %v397
      %v412 = vsel %vm340, %v273, %v404
      %v413 = vmax.bf16 %v258, %v262
      %v414 = vmax.bf16 %v259, %v263
      %v415 = vmax.bf16 %v260, %v264
      %v416 = vmax.bf16 %v261, %v265
      %v417 = vmax.bf16 %v413, %v341
      %v418 = vmax.bf16 %v414, %v342
      %v419 = vmax.bf16 %v415, %v343
      %v420 = vmax.bf16 %v416, %v344
      %v421 = vmax.bf16 %v266, %v270
      %v422 = vmax.bf16 %v267, %v271
      %v423 = vmax.bf16 %v268, %v272
      %v424 = vmax.bf16 %v269, %v273
      %v425 = vmax.bf16 %v421, %v409
      %v426 = vmax.bf16 %v422, %v410
      %v427 = vmax.bf16 %v423, %v411
      %v428 = vmax.bf16 %v424, %v412
      %v429 = vmax.bf16 %v417, %v425
      %v430 = vmax.bf16 %v418, %v426
      %v431 = vmax.bf16 %v419, %v427
      %v432 = vmax.bf16 %v420, %v428
      %v433 = vmax.bf16 %v429, %v425
      %v434 = vmax.bf16 %v430, %v425
      %v435 = vmax.bf16 %v431, %v426
      %v436 = vmax.bf16 %v432, %v427
      %vm437 = vcmask 517120
      %438 = vst.msk [vmem:[%s257] sm:$0x3] %vm437, %v433
      %439 = vst.msk [vmem:[%s257 + $0x2] sm:$0x3] %vm437, %v434
      %440 = vst.msk [vmem:[%s257 + $0x4] sm:$0x3] %vm437, %v435
      %441 = vst.msk [vmem:[%s257 + $0x6] sm:$0x3] %vm437, %v436
      %p442 = scmp.lt.s32.totalorder %s15, 1
      %s443 = scalar_select %p442, %s15, 1
      %s444 = smul.addr %s443, 4
      %s445 = smul.addr %s444, 2
      %s446 = scalar_lea.vmem %s4, %s445
      // Predicated region
      $region37: #{dist_resnet_forward.5} parent=35 // pred_check
        %p447 = pneg %p137
      $region38: #{dist_resnet_forward.5} parent=35 // pred_check_branch
        %449 = sbr.rel (%p447) target = $region40
      $region39: #{dist_resnet_forward.5} parent=35 // pred_region
        _
      $region40: #{dist_resnet_forward.5} parent=35 // pred_fallthru
        _
    $region36: #{dist_resnet_forward.5} parent=5 // pred_fallthru
      _
    %p450 = scmp.le.s32.totalorder 2, %s10
    // Predicated region
    $region41: #{dist_resnet_forward.5} parent=5 // pred_check
      %p451 = pneg %p450
    $region42: #{dist_resnet_forward.5} parent=5 // pred_check_branch
      %453 = sbr.rel (%p451) target = $region44
    $region43: #{dist_resnet_forward.5} parent=5 // pred_region
      %s454 = ssub.s32 %s10, 2
      // Predicated region
      $region45: #{dist_resnet_forward.5} parent=43 // pred_check
        %p455 = pneg %p143
      $region46: #{dist_resnet_forward.5} parent=43 // pred_check_branch
        %457 = sbr.rel (%p455) target = $region48
      $region47: #{dist_resnet_forward.5} parent=43 // pred_region
        %p458 = scmp.lt.s32.totalorder %s16, 1
        %s459 = scalar_select %p458, %s16, 1
        %s460 = smul.addr %s459, 4
        %s461 = smul.addr %s460, 2
        %s462 = scalar_lea.vmem %s4, %s461
      $region48: #{dist_resnet_forward.5} parent=43 // pred_fallthru
        _
    $region44: #{dist_resnet_forward.5} parent=5 // pred_fallthru
      _
  $region6: #{dist_resnet_forward.5} parent=0 // loop_footer
    %s14 = sadd.s32 1, %s10
  $region7: #{dist_resnet_forward.5} parent=0 // loop_footer_branch
    %9 = sbr.rel target = $region3
  $region8: #{dist_resnet_forward.5} parent=0 // loop_exit
    _

// kernel: dist_resnet_forward.4
$region0: #{dist_resnet_forward.4}
  #allocation0 [shape = 'u32[]', space=smem, size = 0x4, offset = 0x4, fixed_abs, tag = 'smem constant byte address 0x4 - core index']
  #allocation1 [shape = 'u32[144,128]{1,0:T(1,128)}', space=vmem, size = 0x12000, scoped, tag = 'internal scratch']
  %s0 = inlined_call_operand.vmem [shape: bf16[2,64,256], index: 0, kind: input, shape index: {}]
  %s1 = inlined_call_operand.vmem [shape: bf16[256,64], index: 1, kind: input, shape index: {}]
  %s2 = inlined_call_operand.vmem [shape: f32[1,64], index: 2, kind: input, shape index: {}]
  %s3 = inlined_call_operand.vmem [shape: bf16[2,64,64], index: 3, kind: output, shape index: {}]
  %s4 = sld [smem:[#allocation0]]
  $region45: #{dist_resnet_forward.4} parent=0
    _
  %s6 = ssub.s32 1, %s4
  %s7 = scalar_select 0, %s6, %s4
  loop: start=0, step=1, limit=4
  $region2: #{dist_resnet_forward.4} parent=0 // loop_pre_header
    _
  $region3: #{dist_resnet_forward.4} parent=0 // loop_header
    %s9 = sphi 0, %s13
    %p10 = scmp.ge.s32.totalorder %s9, 4
    %s16 = sphi 0, %s28
    %s17 = sphi 0, %s24
    %s18 = sphi 0, %s16
    %s19 = sphi 0, %s17
    %s20 = sphi 0, %s18
    %s21 = sphi 0, %s19
    %s33 = sphi 0, %s35
    %s36 = sphi 0, %s33
    %s37 = sphi 0, %s36
    %s53 = sphi 0, %s37
    %s57 = sphi 0, %s57
    %s59 = sphi 0, %s57
    %s60 = sphi 0, %s59
    %s74 = sphi 0, %s60
    %s78 = sphi 0, %s78
    %s80 = sphi 0, %s78
    %s81 = sphi 0, %s80
    %s95 = sphi 0, %s81
    %s103 = sphi 0, %s105
    %s106 = sphi 0, %s103
    %s107 = sphi 0, %s106
    %s123 = sphi 0, %s107
  $region4: #{dist_resnet_forward.4} parent=0 // loop_header_branch
    %12 = sbr.rel (%p10) target = $region8
  $region5: #{dist_resnet_forward.4} parent=0 // loop_body
    %s14 = ssub.s32 %s9, 1
    %s15 = ssub.s32 %s9, 2
    %s22 = sadd.s32 1, %s17
    %p23 = scmp.ge.s32.totalorder %s22, 1
    %s24 = scalar_select %p23, 0, %s22
    %s25 = sadd.s32 1, %s16
    %s26 = scalar_select %p23, %s25, %s16
    %p27 = scmp.ge.s32.totalorder %s26, 2
    %s28 = scalar_select %p27, 0, %s26
    %s29 = ssub.s32 %s16, %s28
    %s30 = ssub.s32 %s17, %s24
    %s31 = sor.u32 %s29, %s30
    %p32 = scmp.eq.s32.totalorder %s31, 0
    %s34 = sadd.s32 %s33, 1
    %s35 = scalar_select %p32, %s33, %s34
    %p38 = pneg %p32
    %p39 = scmp.eq.s32.totalorder %s9, 1
    %p40 = por %p38, %p39
    %p41 = scmp.ne.s32.totalorder %s33, %s36
    %p42 = scmp.eq.s32.totalorder %s9, 0
    %p43 = por %p41, %p42
    %p44 = scmp.ne.s32.totalorder %s33, %s36
    %p45 = scmp.eq.s32.totalorder %s14, 1
    %p46 = por %p44, %p45
    %p47 = scmp.ne.s32.totalorder %s36, %s37
    %p48 = scmp.eq.s32.totalorder %s14, 0
    %p49 = por %p47, %p48
    %p50 = scmp.ne.s32.totalorder %s36, %s37
    %p51 = scmp.eq.s32.totalorder %s15, 1
    %p52 = por %p50, %p51
    %p54 = scmp.ne.s32.totalorder %s37, %s53
    %p55 = scmp.eq.s32.totalorder %s15, 0
    %p56 = por %p54, %p55
    %s58 = sadd.s32 %s57, 1
    %p61 = scmp.eq.s32.totalorder %s9, 1
    %p62 = scmp.ne.s32.totalorder %s57, %s59
    %p63 = scmp.eq.s32.totalorder %s9, 0
    %p64 = por %p62, %p63
    %p65 = scmp.ne.s32.totalorder %s57, %s59
    %p66 = scmp.eq.s32.totalorder %s14, 1
    %p67 = por %p65, %p66
    %p68 = scmp.ne.s32.totalorder %s59, %s60
    %p69 = scmp.eq.s32.totalorder %s14, 0
    %p70 = por %p68, %p69
    %p71 = scmp.ne.s32.totalorder %s59, %s60
    %p72 = scmp.eq.s32.totalorder %s15, 1
    %p73 = por %p71, %p72
    %p75 = scmp.ne.s32.totalorder %s60, %s74
    %p76 = scmp.eq.s32.totalorder %s15, 0
    %p77 = por %p75, %p76
    %s79 = sadd.s32 %s78, 1
    %p82 = scmp.eq.s32.totalorder %s9, 1
    %p83 = scmp.ne.s32.totalorder %s78, %s80
    %p84 = scmp.eq.s32.totalorder %s9, 0
    %p85 = por %p83, %p84
    %p86 = scmp.ne.s32.totalorder %s78, %s80
    %p87 = scmp.eq.s32.totalorder %s14, 1
    %p88 = por %p86, %p87
    %p89 = scmp.ne.s32.totalorder %s80, %s81
    %p90 = scmp.eq.s32.totalorder %s14, 0
    %p91 = por %p89, %p90
    %p92 = scmp.ne.s32.totalorder %s80, %s81
    %p93 = scmp.eq.s32.totalorder %s15, 1
    %p94 = por %p92, %p93
    %p96 = scmp.ne.s32.totalorder %s81, %s95
    %p97 = scmp.eq.s32.totalorder %s15, 0
    %p98 = por %p96, %p97
    %s99 = ssub.s32 %s16, %s28
    %s100 = ssub.s32 %s17, %s24
    %s101 = sor.u32 %s99, %s100
    %p102 = scmp.eq.s32.totalorder %s101, 0
    %s104 = sadd.s32 %s103, 1
    %s105 = scalar_select %p102, %s103, %s104
    %p108 = pneg %p102
    %p109 = scmp.eq.s32.totalorder %s9, 1
    %p110 = por %p108, %p109
    %p111 = scmp.ne.s32.totalorder %s103, %s106
    %p112 = scmp.eq.s32.totalorder %s9, 0
    %p113 = por %p111, %p112
    %p114 = scmp.ne.s32.totalorder %s103, %s106
    %p115 = scmp.eq.s32.totalorder %s14, 1
    %p116 = por %p114, %p115
    %p117 = scmp.ne.s32.totalorder %s106, %s107
    %p118 = scmp.eq.s32.totalorder %s14, 0
    %p119 = por %p117, %p118
    %p120 = scmp.ne.s32.totalorder %s106, %s107
    %p121 = scmp.eq.s32.totalorder %s15, 1
    %p122 = por %p120, %p121
    %p124 = scmp.ne.s32.totalorder %s107, %s123
    %p125 = scmp.eq.s32.totalorder %s15, 0
    %p126 = por %p124, %p125
    %p127 = scmp.le.s32.totalorder 1, %s9
    %p128 = scmp.lt.s32.totalorder %s9, 3
    %p129 = pnand %p127, %p128
    %p130 = pneg %p129
    // Predicated region
    $region9: #{dist_resnet_forward.4} parent=5 // pred_check
      _
    $region10: #{dist_resnet_forward.4} parent=5 // pred_check_branch
      %132 = sbr.rel (%p129) target = $region12
    $region11: #{dist_resnet_forward.4} parent=5 // pred_region
      %s133 = ssub.s32 %s9, 1
      // Predicated region
      $region13: #{dist_resnet_forward.4} parent=11 // pred_check
        %p134 = pneg %p70
      $region14: #{dist_resnet_forward.4} parent=11 // pred_check_branch
        %136 = sbr.rel (%p134) target = $region16
      $region15: #{dist_resnet_forward.4} parent=11 // pred_region
        _
      $region16: #{dist_resnet_forward.4} parent=11 // pred_fallthru
        _
      // Predicated region
      $region17: #{dist_resnet_forward.4} parent=11 // pred_check
        %p137 = pneg %p91
      $region18: #{dist_resnet_forward.4} parent=11 // pred_check_branch
        %139 = sbr.rel (%p137) target = $region20
      $region19: #{dist_resnet_forward.4} parent=11 // pred_region
        _
      $region20: #{dist_resnet_forward.4} parent=11 // pred_fallthru
        _
    $region12: #{dist_resnet_forward.4} parent=5 // pred_fallthru
      _
    %p140 = scmp.lt.s32.totalorder %s9, 2
    // Predicated region
    $region21: #{dist_resnet_forward.4} parent=5 // pred_check
      %p141 = pneg %p140
    $region22: #{dist_resnet_forward.4} parent=5 // pred_check_branch
      %143 = sbr.rel (%p141) target = $region24
    $region23: #{dist_resnet_forward.4} parent=5 // pred_region
      // Predicated region
      $region25: #{dist_resnet_forward.4} parent=23 // pred_check
        %p144 = pneg %p43
      $region26: #{dist_resnet_forward.4} parent=23 // pred_check_branch
        %146 = sbr.rel (%p144) target = $region28
      $region27: #{dist_resnet_forward.4} parent=23 // pred_region
        %s147 = smul.u32 8, %s17
        %p148 = scmp.lt.s32.totalorder %s16, 1
        %s149 = scalar_select %p148, %s16, 1
        %p150 = scmp.lt.s32.totalorder %s147, 7
        %s151 = scalar_select %p150, %s147, 7
        %s152 = smul.addr %s151, 2
        %s153 = smul.addr %s149, 16
        %s154 = sadd.s32 %s152, %s153
        %s155 = smul.addr %s154, 4
        %s156 = scalar_lea.vmem %s0, %s155
        %s157 = smul.u32 8, %s17
      $region28: #{dist_resnet_forward.4} parent=23 // pred_fallthru
        _
    $region24: #{dist_resnet_forward.4} parent=5 // pred_fallthru
      _
    %p158 = scmp.le.s32.totalorder 1, %s9
    %p159 = scmp.lt.s32.totalorder %s9, 3
    %p160 = pnand %p158, %p159
    %p161 = pneg %p160
    // Predicated region
    $region29: #{dist_resnet_forward.4} parent=5 // pred_check
      _
    $region30: #{dist_resnet_forward.4} parent=5 // pred_check_branch
      %163 = sbr.rel (%p160) target = $region32
    $region31: #{dist_resnet_forward.4} parent=5 // pred_region
      %s164 = ssub.s32 %s9, 1
      %s165 = smul.u32 8, %s19
      %p166 = scmp.lt.s32.totalorder %s18, 1
      %s167 = scalar_select %p166, %s18, 1
      %p168 = scmp.lt.s32.totalorder %s165, 7
      %s169 = scalar_select %p168, %s165, 7
      %s170 = smul.addr %s169, 2
      %s171 = smul.addr %s167, 16
      %s172 = sadd.s32 %s170, %s171
      %s173 = smul.addr %s172, 4
      %s174 = scalar_lea.vmem %s0, %s173
      %p175 = pneg %p49
      %p176 = pneg %p46
      %p177 = pneg %p70
      %p178 = pneg %p67
      %p179 = pneg %p91
      %p180 = pneg %p88
      %p181 = pneg %p119
      %p182 = pneg %p116
      %s183 = smul.u32 8, %s19
      %p184 = scmp.lt.s32.totalorder %s18, 1
      %s185 = scalar_select %p184, %s18, 1
      %p186 = scmp.lt.s32.totalorder %s183, 7
      %s187 = scalar_select %p186, %s183, 7
      %s188 = smul.addr %s185, 8
      %s189 = sadd.s32 %s187, %s188
      %s190 = smul.addr %s189, 4
      %s191 = scalar_lea.vmem %s3, %s190
      %s192 = smul.u32 8, %s19
      %p193 = scmp.lt.s32.totalorder %s18, 1
      %s194 = scalar_select %p193, %s18, 1
      %p195 = scmp.lt.s32.totalorder %s192, 7
      %s196 = scalar_select %p195, %s192, 7
      %s197 = smul.addr %s196, 2
      %s198 = smul.addr %s194, 16
      %s199 = sadd.s32 %s197, %s198
      %s200 = smul.addr %s199, 4
      %s201 = scalar_lea.vmem %s0, %s200
      %s202 = smul.u32 8, %s19
      %s203 = smul.u32 8, %s19
      %p204 = scmp.lt.s32.totalorder %s18, 1
      %s205 = scalar_select %p204, %s18, 1
      %p206 = scmp.lt.s32.totalorder %s203, 7
      %s207 = scalar_select %p206, %s203, 7
      %s208 = smul.addr %s205, 8
      %s209 = sadd.s32 %s207, %s208
      %s210 = smul.addr %s209, 4
      %s211 = scalar_lea.vmem %s3, %s210
      %s212 = smul.u32 8, %s19
      %v214 = vld [vmem:[%s201] sm:$0xff]
      %v215 = vld [vmem:[%s201 + $0x8] sm:$0xff]
      %v216 = vld [vmem:[%s201 + $0x10] sm:$0xff]
      %v217 = vld [vmem:[%s201 + $0x18] sm:$0xff]
      %v218 = vld [vmem:[%s201 + $0x20] sm:$0xff]
      %v219 = vld [vmem:[%s201 + $0x28] sm:$0xff]
      %v220 = vld [vmem:[%s201 + $0x30] sm:$0xff]
      %v221 = vld [vmem:[%s201 + $0x38] sm:$0xff]
      %v222 = vld [vmem:[%s1] sm:$0xf]
      %v223 = vld [vmem:[%s1 + $0x4] sm:$0xf]
      %v224 = vld [vmem:[%s1 + $0x8] sm:$0xf]
      %v225 = vld [vmem:[%s1 + $0xc] sm:$0xf]
      %v226 = vld [vmem:[%s1 + $0x10] sm:$0xf]
      %v227 = vld [vmem:[%s1 + $0x14] sm:$0xf]
      %v228 = vld [vmem:[%s1 + $0x18] sm:$0xf]
      %v229 = vld [vmem:[%s1 + $0x1c] sm:$0xf]
      %v230 = vld [vmem:[%s1 + $0x20] sm:$0xf]
      %v231 = vld [vmem:[%s1 + $0x24] sm:$0xf]
      %v232 = vld [vmem:[%s1 + $0x28] sm:$0xf]
      %v233 = vld [vmem:[%s1 + $0x2c] sm:$0xf]
      %v234 = vld [vmem:[%s1 + $0x30] sm:$0xf]
      %v235 = vld [vmem:[%s1 + $0x34] sm:$0xf]
      %v236 = vld [vmem:[%s1 + $0x38] sm:$0xf]
      %v237 = vld [vmem:[%s1 + $0x3c] sm:$0xf]
      %v238 = vld [vmem:[%s1 + $0x40] sm:$0xf]
      %v239 = vld [vmem:[%s1 + $0x44] sm:$0xf]
      %v240 = vld [vmem:[%s1 + $0x48] sm:$0xf]
      %v241 = vld [vmem:[%s1 + $0x4c] sm:$0xf]
      %v242 = vld [vmem:[%s1 + $0x50] sm:$0xf]
      %v243 = vld [vmem:[%s1 + $0x54] sm:$0xf]
      %v244 = vld [vmem:[%s1 + $0x58] sm:$0xf]
      %v245 = vld [vmem:[%s1 + $0x5c] sm:$0xf]
      %v246 = vld [vmem:[%s1 + $0x60] sm:$0xf]
      %v247 = vld [vmem:[%s1 + $0x64] sm:$0xf]
      %v248 = vld [vmem:[%s1 + $0x68] sm:$0xf]
      %v249 = vld [vmem:[%s1 + $0x6c] sm:$0xf]
      %v250 = vld [vmem:[%s1 + $0x70] sm:$0xf]
      %v251 = vld [vmem:[%s1 + $0x74] sm:$0xf]
      %v252 = vld [vmem:[%s1 + $0x78] sm:$0xf]
      %v253 = vld [vmem:[%s1 + $0x7c] sm:$0xf]
      %v254 = vld [vmem:[%s2] sm:$0x1]
      %v256 = vlaneseq
      %v257 = vshrl.u32 %v256, 7
      %v258 = vsub.s32 0, %v257
      %v259 = vrot.slane %v254, %v258
      %v269 = vunpack.c.l.b16 %v214
      %v270 = vunpack.c.h.b16 %v214
      %v271 = vunpack.c.l.b16 %v215
      %v272 = vunpack.c.h.b16 %v215
      %v273 = vunpack.c.l.b16 %v216
      %v274 = vunpack.c.h.b16 %v216
      %v275 = vunpack.c.l.b16 %v217
      %v276 = vunpack.c.h.b16 %v217
      %v277 = vunpack.c.l.b16 %v218
      %v278 = vunpack.c.h.b16 %v218
      %v279 = vunpack.c.l.b16 %v219
      %v280 = vunpack.c.h.b16 %v219
      %v281 = vunpack.c.l.b16 %v220
      %v282 = vunpack.c.h.b16 %v220
      %v283 = vunpack.c.l.b16 %v221
      %v284 = vunpack.c.h.b16 %v221
      %v285 = vpack.c.b16 %v271, %v269
      %v286 = vpack.c.b16 %v272, %v270
      %v287 = vpack.c.b16 %v275, %v273
      %v288 = vpack.c.b16 %v276, %v274
      %v289 = vpack.c.b16 %v279, %v277
      %v290 = vpack.c.b16 %v280, %v278
      %v291 = vpack.c.b16 %v283, %v281
      %v292 = vpack.c.b16 %v284, %v282
      %v333 = vunpack.c.l.b16 %v222
      %v334 = vunpack.c.l.b16 %v223
      %v335 = vunpack.c.l.b16 %v224
      %v336 = vunpack.c.l.b16 %v225
      %v337 = vunpack.c.l.b16 %v226
      %v338 = vunpack.c.l.b16 %v227
      %v339 = vunpack.c.l.b16 %v228
      %v340 = vunpack.c.l.b16 %v229
      %v341 = vunpack.c.l.b16 %v230
      %v342 = vunpack.c.l.b16 %v231
      %v343 = vunpack.c.l.b16 %v232
      %v344 = vunpack.c.l.b16 %v233
      %v345 = vunpack.c.l.b16 %v234
      %v346 = vunpack.c.l.b16 %v235
      %v347 = vunpack.c.l.b16 %v236
      %v348 = vunpack.c.l.b16 %v237
      %v349 = vunpack.c.l.b16 %v238
      %v350 = vunpack.c.l.b16 %v239
      %v351 = vunpack.c.l.b16 %v240
      %v352 = vunpack.c.l.b16 %v241
      %v353 = vunpack.c.l.b16 %v242
      %v354 = vunpack.c.l.b16 %v243
      %v355 = vunpack.c.l.b16 %v244
      %v356 = vunpack.c.l.b16 %v245
      %v357 = vunpack.c.l.b16 %v246
      %v358 = vunpack.c.l.b16 %v247
      %v359 = vunpack.c.l.b16 %v248
      %v360 = vunpack.c.l.b16 %v249
      %v361 = vunpack.c.l.b16 %v250
      %v362 = vunpack.c.l.b16 %v251
      %v363 = vunpack.c.l.b16 %v252
      %v364 = vunpack.c.l.b16 %v253
      %v365 = vpack.c.b16 %v334, %v333
      %v366 = vpack.c.b16 %v336, %v335
      %v367 = vpack.c.b16 %v338, %v337
      %v368 = vpack.c.b16 %v340, %v339
      %v369 = vpack.c.b16 %v342, %v341
      %v370 = vpack.c.b16 %v344, %v343
      %v371 = vpack.c.b16 %v346, %v345
      %v372 = vpack.c.b16 %v348, %v347
      %v373 = vpack.c.b16 %v350, %v349
      %v374 = vpack.c.b16 %v352, %v351
      %v375 = vpack.c.b16 %v354, %v353
      %v376 = vpack.c.b16 %v356, %v355
      %v377 = vpack.c.b16 %v358, %v357
      %v378 = vpack.c.b16 %v360, %v359
      %v379 = vpack.c.b16 %v362, %v361
      %v380 = vpack.c.b16 %v364, %v363
      %397 = vmatprep.subr.bf16.mxu0 0
      %398 = vmatpush1.bf16.msra.mxu0 %v365
      %399 = vmatprep.subr.bf16.mxu0 0
      %400 = vmatpush1.bf16.msra.mxu0 %v366
      %401 = vmatprep.subr.bf16.mxu0 0
      %402 = vmatpush1.bf16.msra.mxu0 %v367
      %403 = vmatprep.subr.bf16.mxu0 0
      %404 = vmatpush1.bf16.msra.mxu0 %v368
      %405 = vmatprep.subr.bf16.mxu0 0
      %406 = vmatpush1.bf16.msra.mxu0 %v369
      %407 = vmatprep.subr.bf16.mxu0 0
      %408 = vmatpush1.bf16.msra.mxu0 %v370
      %409 = vmatprep.subr.bf16.mxu0 0
      %410 = vmatpush1.bf16.msra.mxu0 %v371
      %411 = vmatprep.subr.bf16.mxu0 0
      %412 = vmatpush1.bf16.msra.mxu0 %v372
      %413 = vmatprep.subr.bf16.mxu0 0
      %414 = vmatpush1.bf16.msra.mxu0 %v373
      %415 = vmatprep.subr.bf16.mxu0 0
      %416 = vmatpush1.bf16.msra.mxu0 %v374
      %417 = vmatprep.subr.bf16.mxu0 0
      %418 = vmatpush1.bf16.msra.mxu0 %v375
      %419 = vmatprep.subr.bf16.mxu0 0
      %420 = vmatpush1.bf16.msra.mxu0 %v376
      %421 = vmatprep.subr.bf16.mxu0 0
      %422 = vmatpush1.bf16.msra.mxu0 %v377
      %423 = vmatprep.subr.bf16.mxu0 0
      %424 = vmatpush1.bf16.msra.mxu0 %v378
      %425 = vmatprep.subr.bf16.mxu0 0
      %426 = vmatpush1.bf16.msra.mxu0 %v379
      %427 = vmatprep.subr.bf16.mxu0 0
      %428 = vmatpush1.bf16.msra.mxu0 %v380
      %429 = vmatprep.mubr.bf16.mxu0 %v286
      %430 = vmatmul.mubr.bf16.gmra.mrb[0].mxu0 %v285
      %v431 = vpop.f32.mrb[0].mxu0
      %v432 = vadd.f32 %v259, %v431
      %v433 = vpop.f32.mrb[0].mxu0
      %v434 = vpop.f32.mrb[0].mxu0
      %v435 = vadd.f32 %v259, %v434
      %v436 = vpop.f32.mrb[0].mxu0
      %437 = vmatprep.mubr.bf16.mxu0 %v288
      %438 = vmatmul.mubr.bf16.gmra.mrb[0].mxu0 %v287
      %v439 = vpop.f32.mrb[0].mxu0
      %v440 = vadd.f32 %v259, %v439
      %v441 = vpop.f32.mrb[0].mxu0
      %v442 = vpop.f32.mrb[0].mxu0
      %v443 = vadd.f32 %v259, %v442
      %v444 = vpop.f32.mrb[0].mxu0
      %445 = vmatprep.mubr.bf16.mxu0 %v290
      %446 = vmatmul.mubr.bf16.gmra.mrb[0].mxu0 %v289
      %v447 = vpop.f32.mrb[0].mxu0
      %v448 = vadd.f32 %v259, %v447
      %v449 = vpop.f32.mrb[0].mxu0
      %v450 = vpop.f32.mrb[0].mxu0
      %v451 = vadd.f32 %v259, %v450
      %v452 = vpop.f32.mrb[0].mxu0
      %453 = vmatprep.mubr.bf16.mxu0 %v292
      %454 = vmatmul.mubr.bf16.gmra.mrb[0].mxu0 %v291
      %v455 = vpop.f32.mrb[0].mxu0
      %v456 = vadd.f32 %v259, %v455
      %v457 = vpop.f32.mrb[0].mxu0
      %v458 = vpop.f32.mrb[0].mxu0
      %v459 = vadd.f32 %v259, %v458
      %v460 = vpop.f32.mrb[0].mxu0
      %461 = vdwg.mxu0
      %v462 = vmax.f32 %v432, 0.0
      %v463 = vmax.f32 %v435, 0.0
      %v464 = vmax.f32 %v440, 0.0
      %v465 = vmax.f32 %v443, 0.0
      %v466 = vmax.f32 %v448, 0.0
      %v467 = vmax.f32 %v451, 0.0
      %v468 = vmax.f32 %v456, 0.0
      %v469 = vmax.f32 %v459, 0.0
      %v470 = vpack.c.bf16 %v463, %v462
      %v471 = vpack.c.bf16 %v465, %v464
      %v472 = vpack.c.bf16 %v467, %v466
      %v473 = vpack.c.bf16 %v469, %v468
      %v478 = vunpack.c.l.b16 %v470
      %v479 = vunpack.c.h.b16 %v470
      %v480 = vunpack.c.l.b16 %v471
      %v481 = vunpack.c.h.b16 %v471
      %v482 = vunpack.c.l.b16 %v472
      %v483 = vunpack.c.h.b16 %v472
      %v484 = vunpack.c.l.b16 %v473
      %v485 = vunpack.c.h.b16 %v473
      %v486 = vpack.c.b16 %v478, %v478
      %v487 = vpack.c.b16 %v479, %v479
      %v488 = vpack.c.b16 %v480, %v480
      %v489 = vpack.c.b16 %v481, %v481
      %v490 = vpack.c.b16 %v482, %v482
      %v491 = vpack.c.b16 %v483, %v483
      %v492 = vpack.c.b16 %v484, %v484
      %v493 = vpack.c.b16 %v485, %v485
      %vm502 = vcmask 519168
      %503 = vst.msk [vmem:[%s211] sm:$0xf] %vm502, %v486
      %504 = vst.msk [vmem:[%s211 + $0x4] sm:$0xf] %vm502, %v487
      %505 = vst.msk [vmem:[%s211 + $0x8] sm:$0xf] %vm502, %v488
      %506 = vst.msk [vmem:[%s211 + $0xc] sm:$0xf] %vm502, %v489
      %507 = vst.msk [vmem:[%s211 + $0x10] sm:$0xf] %vm502, %v490
      %508 = vst.msk [vmem:[%s211 + $0x14] sm:$0xf] %vm502, %v491
      %509 = vst.msk [vmem:[%s211 + $0x18] sm:$0xf] %vm502, %v492
      %510 = vst.msk [vmem:[%s211 + $0x1c] sm:$0xf] %vm502, %v493
      %s511 = smul.u32 8, %s19
      %p512 = scmp.lt.s32.totalorder %s18, 1
      %s513 = scalar_select %p512, %s18, 1
      %p514 = scmp.lt.s32.totalorder %s511, 7
      %s515 = scalar_select %p514, %s511, 7
      %s516 = smul.addr %s513, 8
      %s517 = sadd.s32 %s515, %s516
      %s518 = smul.addr %s517, 4
      %s519 = scalar_lea.vmem %s3, %s518
      // Predicated region
      $region33: #{dist_resnet_forward.4} parent=31 // pred_check
        %p520 = pneg %p116
      $region34: #{dist_resnet_forward.4} parent=31 // pred_check_branch
        %522 = sbr.rel (%p520) target = $region36
      $region35: #{dist_resnet_forward.4} parent=31 // pred_region
        %s523 = smul.u32 8, %s19
      $region36: #{dist_resnet_forward.4} parent=31 // pred_fallthru
        _
    $region32: #{dist_resnet_forward.4} parent=5 // pred_fallthru
      _
    %p524 = scmp.le.s32.totalorder 2, %s9
    // Predicated region
    $region37: #{dist_resnet_forward.4} parent=5 // pred_check
      %p525 = pneg %p524
    $region38: #{dist_resnet_forward.4} parent=5 // pred_check_branch
      %527 = sbr.rel (%p525) target = $region40
    $region39: #{dist_resnet_forward.4} parent=5 // pred_region
      %s528 = ssub.s32 %s9, 2
      // Predicated region
      $region41: #{dist_resnet_forward.4} parent=39 // pred_check
        %p529 = pneg %p122
      $region42: #{dist_resnet_forward.4} parent=39 // pred_check_branch
        %531 = sbr.rel (%p529) target = $region44
      $region43: #{dist_resnet_forward.4} parent=39 // pred_region
        %s532 = smul.u32 8, %s21
        %p533 = scmp.lt.s32.totalorder %s20, 1
        %s534 = scalar_select %p533, %s20, 1
        %p535 = scmp.lt.s32.totalorder %s532, 7
        %s536 = scalar_select %p535, %s532, 7
        %s537 = smul.addr %s534, 8
        %s538 = sadd.s32 %s536, %s537
        %s539 = smul.addr %s538, 4
        %s540 = scalar_lea.vmem %s3, %s539
      $region44: #{dist_resnet_forward.4} parent=39 // pred_fallthru
        _
    $region40: #{dist_resnet_forward.4} parent=5 // pred_fallthru
      _
  $region6: #{dist_resnet_forward.4} parent=0 // loop_footer
    %s13 = sadd.s32 1, %s9
  $region7: #{dist_resnet_forward.4} parent=0 // loop_footer_branch
    %8 = sbr.rel target = $region3
  $region8: #{dist_resnet_forward.4} parent=0 // loop_exit
    _

// kernel: dist_resnet_forward.6
$region0: #{dist_resnet_forward.6}
  #allocation0 [shape = 'u32[]', space=smem, size = 0x4, offset = 0x4, fixed_abs, tag = 'smem constant byte address 0x4 - core index']
  #allocation1 [shape = 'u32[144,128]{1,0:T(1,128)}', space=vmem, size = 0x12000, scoped, tag = 'internal scratch']
  #allocation2 [shape = 'bf16[44,64]{1,0:T(8,128)(2,1)}', space=vmem, size = 0x3000, scoped, tag = 'scratch operand']
  %s0 = inlined_call_operand.vmem [shape: bf16[2,44,64], index: 0, kind: input, shape index: {}]
  %s1 = inlined_call_operand.vmem [shape: bf16[576,64], index: 1, kind: input, shape index: {}]
  %s2 = inlined_call_operand.vmem [shape: f32[1,64], index: 2, kind: input, shape index: {}]
  %s3 = inlined_call_operand.vmem [shape: bf16[576,64], index: 3, kind: input, shape index: {}]
  %s4 = inlined_call_operand.vmem [shape: f32[1,64], index: 4, kind: input, shape index: {}]
  %s5 = inlined_call_operand.vmem [shape: bf16[2,44,64], index: 5, kind: output, shape index: {}]
  %s6 = sld [smem:[#allocation0]]
  $region53: #{dist_resnet_forward.6} parent=0
    _
  %s8 = ssub.s32 1, %s6
  %s9 = scalar_select 0, %s8, %s6
  loop: start=0, step=1, limit=4
  $region2: #{dist_resnet_forward.6} parent=0 // loop_pre_header
    _
  $region3: #{dist_resnet_forward.6} parent=0 // loop_header
    %s11 = sphi 0, %s15
    %p12 = scmp.ge.s32.totalorder %s11, 4
    %s21 = sphi 0, %s23
    %s24 = sphi 0, %s21
    %s25 = sphi 0, %s24
    %s41 = sphi 0, %s25
    %s45 = sphi 0, %s45
    %s47 = sphi 0, %s45
    %s48 = sphi 0, %s47
    %s62 = sphi 0, %s48
    %s66 = sphi 0, %s66
    %s68 = sphi 0, %s66
    %s69 = sphi 0, %s68
    %s83 = sphi 0, %s69
    %s87 = sphi 0, %s87
    %s89 = sphi 0, %s87
    %s90 = sphi 0, %s89
    %s104 = sphi 0, %s90
    %s108 = sphi 0, %s108
    %s110 = sphi 0, %s108
    %s111 = sphi 0, %s110
    %s125 = sphi 0, %s111
    %s131 = sphi 0, %s133
    %s134 = sphi 0, %s131
    %s135 = sphi 0, %s134
    %s151 = sphi 0, %s135
  $region4: #{dist_resnet_forward.6} parent=0 // loop_header_branch
    %14 = sbr.rel (%p12) target = $region8
  $region5: #{dist_resnet_forward.6} parent=0 // loop_body
    %s16 = ssub.s32 %s11, 1
    %s17 = ssub.s32 %s11, 2
    %s18 = sadd.s32 %s11, 1
    %s19 = ssub.s32 %s11, %s18
    %p20 = scmp.eq.s32.totalorder %s19, 0
    %s22 = sadd.s32 %s21, 1
    %s23 = scalar_select %p20, %s21, %s22
    %p26 = pneg %p20
    %p27 = scmp.eq.s32.totalorder %s11, 1
    %p28 = por %p26, %p27
    %p29 = scmp.ne.s32.totalorder %s21, %s24
    %p30 = scmp.eq.s32.totalorder %s11, 0
    %p31 = por %p29, %p30
    %p32 = scmp.ne.s32.totalorder %s21, %s24
    %p33 = scmp.eq.s32.totalorder %s16, 1
    %p34 = por %p32, %p33
    %p35 = scmp.ne.s32.totalorder %s24, %s25
    %p36 = scmp.eq.s32.totalorder %s16, 0
    %p37 = por %p35, %p36
    %p38 = scmp.ne.s32.totalorder %s24, %s25
    %p39 = scmp.eq.s32.totalorder %s17, 1
    %p40 = por %p38, %p39
    %p42 = scmp.ne.s32.totalorder %s25, %s41
    %p43 = scmp.eq.s32.totalorder %s17, 0
    %p44 = por %p42, %p43
    %s46 = sadd.s32 %s45, 1
    %p49 = scmp.eq.s32.totalorder %s11, 1
    %p50 = scmp.ne.s32.totalorder %s45, %s47
    %p51 = scmp.eq.s32.totalorder %s11, 0
    %p52 = por %p50, %p51
    %p53 = scmp.ne.s32.totalorder %s45, %s47
    %p54 = scmp.eq.s32.totalorder %s16, 1
    %p55 = por %p53, %p54
    %p56 = scmp.ne.s32.totalorder %s47, %s48
    %p57 = scmp.eq.s32.totalorder %s16, 0
    %p58 = por %p56, %p57
    %p59 = scmp.ne.s32.totalorder %s47, %s48
    %p60 = scmp.eq.s32.totalorder %s17, 1
    %p61 = por %p59, %p60
    %p63 = scmp.ne.s32.totalorder %s48, %s62
    %p64 = scmp.eq.s32.totalorder %s17, 0
    %p65 = por %p63, %p64
    %s67 = sadd.s32 %s66, 1
    %p70 = scmp.eq.s32.totalorder %s11, 1
    %p71 = scmp.ne.s32.totalorder %s66, %s68
    %p72 = scmp.eq.s32.totalorder %s11, 0
    %p73 = por %p71, %p72
    %p74 = scmp.ne.s32.totalorder %s66, %s68
    %p75 = scmp.eq.s32.totalorder %s16, 1
    %p76 = por %p74, %p75
    %p77 = scmp.ne.s32.totalorder %s68, %s69
    %p78 = scmp.eq.s32.totalorder %s16, 0
    %p79 = por %p77, %p78
    %p80 = scmp.ne.s32.totalorder %s68, %s69
    %p81 = scmp.eq.s32.totalorder %s17, 1
    %p82 = por %p80, %p81
    %p84 = scmp.ne.s32.totalorder %s69, %s83
    %p85 = scmp.eq.s32.totalorder %s17, 0
    %p86 = por %p84, %p85
    %s88 = sadd.s32 %s87, 1
    %p91 = scmp.eq.s32.totalorder %s11, 1
    %p92 = scmp.ne.s32.totalorder %s87, %s89
    %p93 = scmp.eq.s32.totalorder %s11, 0
    %p94 = por %p92, %p93
    %p95 = scmp.ne.s32.totalorder %s87, %s89
    %p96 = scmp.eq.s32.totalorder %s16, 1
    %p97 = por %p95, %p96
    %p98 = scmp.ne.s32.totalorder %s89, %s90
    %p99 = scmp.eq.s32.totalorder %s16, 0
    %p100 = por %p98, %p99
    %p101 = scmp.ne.s32.totalorder %s89, %s90
    %p102 = scmp.eq.s32.totalorder %s17, 1
    %p103 = por %p101, %p102
    %p105 = scmp.ne.s32.totalorder %s90, %s104
    %p106 = scmp.eq.s32.totalorder %s17, 0
    %p107 = por %p105, %p106
    %s109 = sadd.s32 %s108, 1
    %p112 = scmp.eq.s32.totalorder %s11, 1
    %p113 = scmp.ne.s32.totalorder %s108, %s110
    %p114 = scmp.eq.s32.totalorder %s11, 0
    %p115 = por %p113, %p114
    %p116 = scmp.ne.s32.totalorder %s108, %s110
    %p117 = scmp.eq.s32.totalorder %s16, 1
    %p118 = por %p116, %p117
    %p119 = scmp.ne.s32.totalorder %s110, %s111
    %p120 = scmp.eq.s32.totalorder %s16, 0
    %p121 = por %p119, %p120
    %p122 = scmp.ne.s32.totalorder %s110, %s111
    %p123 = scmp.eq.s32.totalorder %s17, 1
    %p124 = por %p122, %p123
    %p126 = scmp.ne.s32.totalorder %s111, %s125
    %p127 = scmp.eq.s32.totalorder %s17, 0
    %p128 = por %p126, %p127
    %s129 = ssub.s32 %s11, %s18
    %p130 = scmp.eq.s32.totalorder %s129, 0
    %s132 = sadd.s32 %s131, 1
    %s133 = scalar_select %p130, %s131, %s132
    %p136 = pneg %p130
    %p137 = scmp.eq.s32.totalorder %s11, 1
    %p138 = por %p136, %p137
    %p139 = scmp.ne.s32.totalorder %s131, %s134
    %p140 = scmp.eq.s32.totalorder %s11, 0
    %p141 = por %p139, %p140
    %p142 = scmp.ne.s32.totalorder %s131, %s134
    %p143 = scmp.eq.s32.totalorder %s16, 1
    %p144 = por %p142, %p143
    %p145 = scmp.ne.s32.totalorder %s134, %s135
    %p146 = scmp.eq.s32.totalorder %s16, 0
    %p147 = por %p145, %p146
    %p148 = scmp.ne.s32.totalorder %s134, %s135
    %p149 = scmp.eq.s32.totalorder %s17, 1
    %p150 = por %p148, %p149
    %p152 = scmp.ne.s32.totalorder %s135, %s151
    %p153 = scmp.eq.s32.totalorder %s17, 0
    %p154 = por %p152, %p153
    %p155 = scmp.le.s32.totalorder 1, %s11
    %p156 = scmp.lt.s32.totalorder %s11, 3
    %p157 = pnand %p155, %p156
    %p158 = pneg %p157
    // Predicated region
    $region9: #{dist_resnet_forward.6} parent=5 // pred_check
      _
    $region10: #{dist_resnet_forward.6} parent=5 // pred_check_branch
      %160 = sbr.rel (%p157) target = $region12
    $region11: #{dist_resnet_forward.6} parent=5 // pred_region
      %s161 = ssub.s32 %s11, 1
      // Predicated region
      $region13: #{dist_resnet_forward.6} parent=11 // pred_check
        %p162 = pneg %p58
      $region14: #{dist_resnet_forward.6} parent=11 // pred_check_branch
        %164 = sbr.rel (%p162) target = $region16
      $region15: #{dist_resnet_forward.6} parent=11 // pred_region
        _
      $region16: #{dist_resnet_forward.6} parent=11 // pred_fallthru
        _
      // Predicated region
      $region17: #{dist_resnet_forward.6} parent=11 // pred_check
        %p165 = pneg %p79
      $region18: #{dist_resnet_forward.6} parent=11 // pred_check_branch
        %167 = sbr.rel (%p165) target = $region20
      $region19: #{dist_resnet_forward.6} parent=11 // pred_region
        _
      $region20: #{dist_resnet_forward.6} parent=11 // pred_fallthru
        _
      // Predicated region
      $region21: #{dist_resnet_forward.6} parent=11 // pred_check
        %p168 = pneg %p100
      $region22: #{dist_resnet_forward.6} parent=11 // pred_check_branch
        %170 = sbr.rel (%p168) target = $region24
      $region23: #{dist_resnet_forward.6} parent=11 // pred_region
        _
      $region24: #{dist_resnet_forward.6} parent=11 // pred_fallthru
        _
      // Predicated region
      $region25: #{dist_resnet_forward.6} parent=11 // pred_check
        %p171 = pneg %p121
      $region26: #{dist_resnet_forward.6} parent=11 // pred_check_branch
        %173 = sbr.rel (%p171) target = $region28
      $region27: #{dist_resnet_forward.6} parent=11 // pred_region
        _
      $region28: #{dist_resnet_forward.6} parent=11 // pred_fallthru
        _
    $region12: #{dist_resnet_forward.6} parent=5 // pred_fallthru
      _
    %p174 = scmp.lt.s32.totalorder %s11, 2
    // Predicated region
    $region29: #{dist_resnet_forward.6} parent=5 // pred_check
      %p175 = pneg %p174
    $region30: #{dist_resnet_forward.6} parent=5 // pred_check_branch
      %177 = sbr.rel (%p175) target = $region32
    $region31: #{dist_resnet_forward.6} parent=5 // pred_region
      // Predicated region
      $region33: #{dist_resnet_forward.6} parent=31 // pred_check
        %p178 = pneg %p31
      $region34: #{dist_resnet_forward.6} parent=31 // pred_check_branch
        %180 = sbr.rel (%p178) target = $region36
      $region35: #{dist_resnet_forward.6} parent=31 // pred_region
        %p181 = scmp.lt.s32.totalorder %s11, 1
        %s182 = scalar_select %p181, %s11, 1
        %s183 = smul.addr %s182, 6
        %s184 = smul.addr %s183, 4
        %s185 = scalar_lea.vmem %s0, %s184
      $region36: #{dist_resnet_forward.6} parent=31 // pred_fallthru
        _
    $region32: #{dist_resnet_forward.6} parent=5 // pred_fallthru
      _
    %p186 = scmp.le.s32.totalorder 1, %s11
    %p187 = scmp.lt.s32.totalorder %s11, 3
    %p188 = pnand %p186, %p187
    %p189 = pneg %p188
    // Predicated region
    $region37: #{dist_resnet_forward.6} parent=5 // pred_check
      _
    $region38: #{dist_resnet_forward.6} parent=5 // pred_check_branch
      %191 = sbr.rel (%p188) target = $region40
    $region39: #{dist_resnet_forward.6} parent=5 // pred_region
      %s192 = ssub.s32 %s11, 1
      %p193 = scmp.lt.s32.totalorder %s16, 1
      %s194 = scalar_select %p193, %s16, 1
      %s195 = smul.addr %s194, 6
      %s196 = smul.addr %s195, 4
      %s197 = scalar_lea.vmem %s0, %s196
      %p198 = pneg %p37
      %p199 = pneg %p34
      %p200 = pneg %p58
      %p201 = pneg %p55
      %p202 = pneg %p79
      %p203 = pneg %p76
      %p204 = pneg %p100
      %p205 = pneg %p97
      %p206 = pneg %p121
      %p207 = pneg %p118
      %p208 = pneg %p147
      %p209 = pneg %p144
      %p210 = scmp.lt.s32.totalorder %s16, 1
      %s211 = scalar_select %p210, %s16, 1
      %s212 = smul.addr %s211, 6
      %s213 = smul.addr %s212, 4
      %s214 = scalar_lea.vmem %s5, %s213
      %p215 = scmp.lt.s32.totalorder %s16, 1
      %s216 = scalar_select %p215, %s16, 1
      %s217 = smul.addr %s216, 6
      %s218 = smul.addr %s217, 4
      %s219 = scalar_lea.vmem %s0, %s218
      %p220 = scmp.lt.s32.totalorder %s16, 1
      %s221 = scalar_select %p220, %s16, 1
      %s222 = smul.addr %s221, 6
      %s223 = smul.addr %s222, 4
      %s224 = scalar_lea.vmem %s5, %s223
      %v226 = vlaneseq
      %v227 = vshrl.u32 %v226, 7
      %v228 = vadd.s32 %v227, 8
      %v229 = vadd.s32 %v227, 16
      %vm230 = vcmp.lt.s32.totalorder %v227, 0
      %v231 = vsub.s32 0, %v227
      %v232 = vsel %vm230, %v231, %v227
      %v233 = vmul.u32.u64.compose %v232, 2863311531
      %v234 = vextract.low.u32 %v233
      %v235 = vextract.high.u32 %v233
      %v236 = vshrl.u32 %v235, 2
      %v237 = vmul.u32 %v236, 6
      %v238 = vsub.s32 %v232, %v237
      %v239 = vsub.s32 0, %v238
      %v240 = vsel %vm230, %v239, %v238
      %vm241 = vcmp.lt.s32.totalorder %v228, 0
      %v242 = vsub.s32 0, %v228
      %v243 = vsel %vm241, %v242, %v228
      %v244 = vmul.u32.u64.compose %v243, 2863311531
      %v245 = vextract.low.u32 %v244
      %v246 = vextract.high.u32 %v244
      %v247 = vshrl.u32 %v246, 2
      %v248 = vmul.u32 %v247, 6
      %v249 = vsub.s32 %v243, %v248
      %v250 = vsub.s32 0, %v249
      %v251 = vsel %vm241, %v250, %v249
      %vm252 = vcmp.lt.s32.totalorder %v229, 0
      %v253 = vsub.s32 0, %v229
      %v254 = vsel %vm252, %v253, %v229
      %v255 = vmul.u32.u64.compose %v254, 2863311531
      %v256 = vextract.low.u32 %v255
      %v257 = vextract.high.u32 %v255
      %v258 = vshrl.u32 %v257, 2
      %v259 = vmul.u32 %v258, 6
      %v260 = vsub.s32 %v254, %v259
      %v261 = vsub.s32 0, %v260
      %v262 = vsel %vm252, %v261, %v260
      %vm263 = vcmp.ne.s32.totalorder %v240, 0
      %vm264 = vcmp.ne.s32.totalorder %v251, 0
      %vm265 = vcmp.ne.s32.totalorder %v262, 0
      %vm266 = vcmp.lt.s32.totalorder %v240, 0
      %vm267 = vcmp.lt.s32.totalorder %v251, 0
      %vm268 = vcmp.lt.s32.totalorder %v262, 0
      %vm269 = vmand %vm266, %vm263
      %vm270 = vmand %vm267, %vm264
      %vm271 = vmand %vm268, %vm265
      %v272 = vadd.s32 %v240, 6
      %v273 = vadd.s32 %v251, 6
      %v274 = vadd.s32 %v262, 6
      %v275 = vsel %vm269, %v272, %v240
      %v276 = vsel %vm270, %v273, %v251
      %v277 = vsel %vm271, %v274, %v262
      %vm278 = vcmp.lt.s32.totalorder %v275, 4
      %vm279 = vcmp.lt.s32.totalorder %v276, 4
      %vm280 = vcmp.lt.s32.totalorder %v277, 4
      %v281 = vld [vmem:[%s219] sm:$0xf]
      %v282 = vld [vmem:[%s219 + $0x4] sm:$0xf]
      %v283 = vld [vmem:[%s219 + $0x8] sm:$0xf]
      %v284 = vld [vmem:[%s219 + $0xc] sm:$0x1]
      %v285 = vld [vmem:[%s219] sm:$0xe]
      %v286 = vld [vmem:[%s219] sm:$0x8]
      %v287 = vld [vmem:[%s219 + $0xc] sm:$0x7]
      %v288 = vld [vmem:[%s219 + $0xc] sm:$0xf]
      %v289 = vld [vmem:[%s219 + $0x4] sm:$0xc]
      %v290 = vld [vmem:[%s219 + $0x10] sm:$0x3]
      %v291 = vld [vmem:[%s219 + $0x10] sm:$0x7]
      %v292 = vld [vmem:[%s219 + $0x4] sm:$0x8]
      %v296 = vunpack.c.l.b16 %v281
      %v297 = vunpack.c.l.b16 %v282
      %v298 = vunpack.c.l.b16 %v283
      %v299 = vpack.c.b16 %v297, %v296
      %v300 = vpack.c.b16 %v298, %v298
      %v302 = vunpack.c.l.b16 %v284
      %v303 = vpack.c.b16 %v302, %v298
      %vm304 = vsmask.f32 7424
      %v306 = vshrl.u32 %v299, 16
      %v308 = vshll.u32 %v299, 16
      %v310 = vrot.slane %v308, 1
      %v311 = vor.u32 %v306, %v310
      %v313 = vshll.u32 %v303, 16
      %v315 = vrot.slane %v313, 1
      %v316 = vsel %vm304, %v311, %v315
      %v317 = vshrl.u32 %v303, 16
      %v319 = vor.u32 %v317, %v315
      %320 = vrot.lane.b32.xlu0 %v316, 64
      %v321 = vpop.permute.xlu0 %320
      %322 = vrot.lane.b32.xlu0 %v319, 64
      %v323 = vpop.permute.xlu0 %322
      %v325 = vunpack.c.l.b16 %v285
      %v326 = vpack.c.b16 %v297, %v325
      %vm327 = vcmask 1046528
      %v328 = vrot.slane %v326, 1
      %v329 = vrot.slane %v303, 1
      %v330 = vsel %vm327, %v328, %v329
      %v333 = vunpack.c.l.b16 %v286
      %v334 = vunpack.c.l.b16 %v287
      %v335 = vpack.c.b16 %v297, %v333
      %v336 = vpack.c.b16 %v334, %v298
      %vm337 = vcmask 1044480
      %v338 = vrot.slane %v335, 3
      %v339 = vrot.slane %v336, 3
      %v340 = vsel %vm337, %v338, %v339
      %341 = vrot.lane.b32.xlu0 %v340, 64
      %v342 = vpop.permute.xlu0 %341
      %343 = vrot.lane.b32.xlu0 %v339, 64
      %v344 = vpop.permute.xlu0 %343
      %v346 = vunpack.c.l.b16 %v288
      %v347 = vpack.c.b16 %v346, %v298
      %vm348 = vsmask.f32 4352
      %v350 = vshrl.u32 %v335, 16
      %v352 = vrot.slane %v350, 3
      %v353 = vshll.u32 %v335, 16
      %v355 = vrot.slane %v353, 4
      %v356 = vor.u32 %v352, %v355
      %v358 = vshrl.u32 %v347, 16
      %v360 = vrot.slane %v358, 3
      %v361 = vshll.u32 %v347, 16
      %v363 = vrot.slane %v361, 4
      %v364 = vor.u32 %v360, %v363
      %v365 = vsel %vm348, %v356, %v364
      %v366 = vpack.c.b16 %v298, %v297
      %v367 = vpack.c.b16 %v346, %v346
      %368 = vrot.lane.b32.xlu0 %v366, 64
      %v369 = vpop.permute.xlu0 %368
      %370 = vrot.lane.b32.xlu0 %v367, 64
      %v371 = vpop.permute.xlu0 %370
      %v374 = vunpack.c.l.b16 %v289
      %v375 = vunpack.c.l.b16 %v290
      %v376 = vpack.c.b16 %v298, %v374
      %v377 = vpack.c.b16 %v375, %v346
      %vm378 = vcmask 1045504
      %v379 = vrot.slane %v376, 2
      %v380 = vrot.slane %v377, 2
      %v381 = vsel %vm378, %v379, %v380
      %v383 = vunpack.c.l.b16 %v291
      %v384 = vpack.c.b16 %v383, %v346
      %vm385 = vsmask.f32 5376
      %v387 = vshrl.u32 %v376, 16
      %v389 = vrot.slane %v387, 2
      %v390 = vshll.u32 %v376, 16
      %v392 = vrot.slane %v390, 3
      %v393 = vor.u32 %v389, %v392
      %v395 = vshrl.u32 %v384, 16
      %v397 = vrot.slane %v395, 2
      %v398 = vshll.u32 %v384, 16
      %v400 = vrot.slane %v398, 3
      %v401 = vor.u32 %v397, %v400
      %v402 = vsel %vm385, %v393, %v401
      %403 = vrot.lane.b32.xlu0 %v402, 64
      %v404 = vpop.permute.xlu0 %403
      %405 = vrot.lane.b32.xlu0 %v401, 64
      %v406 = vpop.permute.xlu0 %405
      %v408 = vunpack.c.l.b16 %v292
      %v409 = vpack.c.b16 %v298, %v408
      %v410 = vrot.slane %v409, 3
      %v411 = vrot.slane %v384, 3
      %v412 = vsel %vm337, %v410, %v411
      %vm413 = vcmask 523264
      %v415 = vsel %vm413, %v299, %v321
      %v419 = vsel %vm413, %v300, %v323
      %v423 = vsel %vm413, %v330, %v342
      %v427 = vsel %vm413, %v329, %v344
      %v431 = vsel %vm413, %v365, %v369
      %v435 = vsel %vm413, %v364, %v371
      %v439 = vsel %vm413, %v381, %v404
      %v443 = vsel %vm413, %v380, %v406
      %v445 = vld [vmem:[%s1] sm:$0xf]
      %v446 = vld [vmem:[%s1 + $0x4] sm:$0xf]
      %v447 = vld [vmem:[%s1 + $0x8] sm:$0xf]
      %v448 = vld [vmem:[%s1 + $0xc] sm:$0xf]
      %v449 = vld [vmem:[%s1 + $0x10] sm:$0xf]
      %v450 = vld [vmem:[%s1 + $0x14] sm:$0xf]
      %v451 = vld [vmem:[%s1 + $0x18] sm:$0xf]
      %v452 = vld [vmem:[%s1 + $0x1c] sm:$0xf]
      %v453 = vld [vmem:[%s1 + $0x20] sm:$0xf]
      %v454 = vld [vmem:[%s1 + $0x24] sm:$0xf]
      %v455 = vld [vmem:[%s1 + $0x28] sm:$0xf]
      %v456 = vld [vmem:[%s1 + $0x2c] sm:$0xf]
      %v457 = vld [vmem:[%s1 + $0x30] sm:$0xf]
      %v458 = vld [vmem:[%s1 + $0x34] sm:$0xf]
      %v459 = vld [vmem:[%s1 + $0x38] sm:$0xf]
      %v460 = vld [vmem:[%s1 + $0x3c] sm:$0xf]
      %v461 = vld [vmem:[%s1 + $0x40] sm:$0xf]
      %v462 = vld [vmem:[%s1 + $0x44] sm:$0xf]
      %v463 = vld [vmem:[%s1 + $0x48] sm:$0xf]
      %v464 = vld [vmem:[%s1 + $0x4c] sm:$0xf]
      %v465 = vld [vmem:[%s1 + $0x50] sm:$0xf]
      %v466 = vld [vmem:[%s1 + $0x54] sm:$0xf]
      %v467 = vld [vmem:[%s1 + $0x58] sm:$0xf]
      %v468 = vld [vmem:[%s1 + $0x5c] sm:$0xf]
      %v469 = vld [vmem:[%s1 + $0x60] sm:$0xf]
      %v470 = vld [vmem:[%s1 + $0x64] sm:$0xf]
      %v471 = vld [vmem:[%s1 + $0x68] sm:$0xf]
      %v472 = vld [vmem:[%s1 + $0x6c] sm:$0xf]
      %v473 = vld [vmem:[%s1 + $0x70] sm:$0xf]
      %v474 = vld [vmem:[%s1 + $0x74] sm:$0xf]
      %v475 = vld [vmem:[%s1 + $0x78] sm:$0xf]
      %v476 = vld [vmem:[%s1 + $0x7c] sm:$0xf]
      %v477 = vld [vmem:[%s1 + $0x80] sm:$0xf]
      %v478 = vld [vmem:[%s1 + $0x84] sm:$0xf]
      %v479 = vld [vmem:[%s1 + $0x88] sm:$0xf]
      %v480 = vld [vmem:[%s1 + $0x8c] sm:$0xf]
      %v481 = vld [vmem:[%s1 + $0x90] sm:$0xf]
      %v482 = vld [vmem:[%s1 + $0x94] sm:$0xf]
      %v483 = vld [vmem:[%s1 + $0x98] sm:$0xf]
      %v484 = vld [vmem:[%s1 + $0x9c] sm:$0xf]
      %v485 = vld [vmem:[%s1 + $0xa0] sm:$0xf]
      %v486 = vld [vmem:[%s1 + $0xa4] sm:$0xf]
      %v487 = vld [vmem:[%s1 + $0xa8] sm:$0xf]
      %v488 = vld [vmem:[%s1 + $0xac] sm:$0xf]
      %v489 = vld [vmem:[%s1 + $0xb0] sm:$0xf]
      %v490 = vld [vmem:[%s1 + $0xb4] sm:$0xf]
      %v491 = vld [vmem:[%s1 + $0xb8] sm:$0xf]
      %v492 = vld [vmem:[%s1 + $0xbc] sm:$0xf]
      %v493 = vld [vmem:[%s1 + $0xc0] sm:$0xf]
      %v494 = vld [vmem:[%s1 + $0xc4] sm:$0xf]
      %v495 = vld [vmem:[%s1 + $0xc8] sm:$0xf]
      %v496 = vld [vmem:[%s1 + $0xcc] sm:$0xf]
      %v497 = vld [vmem:[%s1 + $0xd0] sm:$0xf]
      %v498 = vld [vmem:[%s1 + $0xd4] sm:$0xf]
      %v499 = vld [vmem:[%s1 + $0xd8] sm:$0xf]
      %v500 = vld [vmem:[%s1 + $0xdc] sm:$0xf]
      %v501 = vld [vmem:[%s1 + $0xe0] sm:$0xf]
      %v502 = vld [vmem:[%s1 + $0xe4] sm:$0xf]
      %v503 = vld [vmem:[%s1 + $0xe8] sm:$0xf]
      %v504 = vld [vmem:[%s1 + $0xec] sm:$0xf]
      %v505 = vld [vmem:[%s1 + $0xf0] sm:$0xf]
      %v506 = vld [vmem:[%s1 + $0xf4] sm:$0xf]
      %v507 = vld [vmem:[%s1 + $0xf8] sm:$0xf]
      %v508 = vld [vmem:[%s1 + $0xfc] sm:$0xf]
      %v509 = vld [vmem:[%s1 + $0x100] sm:$0xf]
      %v510 = vld [vmem:[%s1 + $0x104] sm:$0xf]
      %v511 = vld [vmem:[%s1 + $0x108] sm:$0xf]
      %v512 = vld [vmem:[%s1 + $0x10c] sm:$0xf]
      %v513 = vld [vmem:[%s1 + $0x110] sm:$0xf]
      %v514 = vld [vmem:[%s1 + $0x114] sm:$0xf]
      %v515 = vld [vmem:[%s1 + $0x118] sm:$0xf]
      %v516 = vld [vmem:[%s1 + $0x11c] sm:$0xf]
      %v517 = vld [vmem:[%s2] sm:$0x1]
      %v519 = vlaneseq
      %v520 = vshrl.u32 %v519, 7
      %v521 = vsub.s32 0, %v520
      %v522 = vrot.slane %v517, %v521
      %v596 = vunpack.c.l.b16 %v445
      %v597 = vunpack.c.l.b16 %v446
      %v598 = vunpack.c.l.b16 %v447
      %v599 = vunpack.c.l.b16 %v448
      %v600 = vunpack.c.l.b16 %v449
      %v601 = vunpack.c.l.b16 %v450
      %v602 = vunpack.c.l.b16 %v451
      %v603 = vunpack.c.l.b16 %v452
      %v604 = vunpack.c.l.b16 %v453
      %v605 = vunpack.c.l.b16 %v454
      %v606 = vunpack.c.l.b16 %v455
      %v607 = vunpack.c.l.b16 %v456
      %v608 = vunpack.c.l.b16 %v457
      %v609 = vunpack.c.l.b16 %v458
      %v610 = vunpack.c.l.b16 %v459
      %v611 = vunpack.c.l.b16 %v460
      %v612 = vunpack.c.l.b16 %v461
      %v613 = vunpack.c.l.b16 %v462
      %v614 = vunpack.c.l.b16 %v463
      %v615 = vunpack.c.l.b16 %v464
      %v616 = vunpack.c.l.b16 %v465
      %v617 = vunpack.c.l.b16 %v466
      %v618 = vunpack.c.l.b16 %v467
      %v619 = vunpack.c.l.b16 %v468
      %v620 = vunpack.c.l.b16 %v469
      %v621 = vunpack.c.l.b16 %v470
      %v622 = vunpack.c.l.b16 %v471
      %v623 = vunpack.c.l.b16 %v472
      %v624 = vunpack.c.l.b16 %v473
      %v625 = vunpack.c.l.b16 %v474
      %v626 = vunpack.c.l.b16 %v475
      %v627 = vunpack.c.l.b16 %v476
      %v628 = vunpack.c.l.b16 %v477
      %v629 = vunpack.c.l.b16 %v478
      %v630 = vunpack.c.l.b16 %v479
      %v631 = vunpack.c.l.b16 %v480
      %v632 = vunpack.c.l.b16 %v481
      %v633 = vunpack.c.l.b16 %v482
      %v634 = vunpack.c.l.b16 %v483
      %v635 = vunpack.c.l.b16 %v484
      %v636 = vunpack.c.l.b16 %v485
      %v637 = vunpack.c.l.b16 %v486
      %v638 = vunpack.c.l.b16 %v487
      %v639 = vunpack.c.l.b16 %v488
      %v640 = vunpack.c.l.b16 %v489
      %v641 = vunpack.c.l.b16 %v490
      %v642 = vunpack.c.l.b16 %v491
      %v643 = vunpack.c.l.b16 %v492
      %v644 = vunpack.c.l.b16 %v493
      %v645 = vunpack.c.l.b16 %v494
      %v646 = vunpack.c.l.b16 %v495
      %v647 = vunpack.c.l.b16 %v496
      %v648 = vunpack.c.l.b16 %v497
      %v649 = vunpack.c.l.b16 %v498
      %v650 = vunpack.c.l.b16 %v499
      %v651 = vunpack.c.l.b16 %v500
      %v652 = vunpack.c.l.b16 %v501
      %v653 = vunpack.c.l.b16 %v502
      %v654 = vunpack.c.l.b16 %v503
      %v655 = vunpack.c.l.b16 %v504
      %v656 = vunpack.c.l.b16 %v505
      %v657 = vunpack.c.l.b16 %v506
      %v658 = vunpack.c.l.b16 %v507
      %v659 = vunpack.c.l.b16 %v508
      %v660 = vunpack.c.l.b16 %v509
      %v661 = vunpack.c.l.b16 %v510
      %v662 = vunpack.c.l.b16 %v511
      %v663 = vunpack.c.l.b16 %v512
      %v664 = vunpack.c.l.b16 %v513
      %v665 = vunpack.c.l.b16 %v514
      %v666 = vunpack.c.l.b16 %v515
      %v667 = vunpack.c.l.b16 %v516
      %v668 = vpack.c.b16 %v597, %v596
      %v669 = vpack.c.b16 %v599, %v598
      %v670 = vpack.c.b16 %v601, %v600
      %v671 = vpack.c.b16 %v603, %v602
      %v672 = vpack.c.b16 %v605, %v604
      %v673 = vpack.c.b16 %v607, %v606
      %v674 = vpack.c.b16 %v609, %v608
      %v675 = vpack.c.b16 %v611, %v610
      %v676 = vpack.c.b16 %v613, %v612
      %v677 = vpack.c.b16 %v615, %v614
      %v678 = vpack.c.b16 %v617, %v616
      %v679 = vpack.c.b16 %v619, %v618
      %v680 = vpack.c.b16 %v621, %v620
      %v681 = vpack.c.b16 %v623, %v622
      %v682 = vpack.c.b16 %v625, %v624
      %v683 = vpack.c.b16 %v627, %v626
      %v684 = vpack.c.b16 %v629, %v628
      %v685 = vpack.c.b16 %v631, %v630
      %v686 = vpack.c.b16 %v633, %v632
      %v687 = vpack.c.b16 %v635, %v634
      %v688 = vpack.c.b16 %v637, %v636
      %v689 = vpack.c.b16 %v639, %v638
      %v690 = vpack.c.b16 %v641, %v640
      %v691 = vpack.c.b16 %v643, %v642
      %v692 = vpack.c.b16 %v645, %v644
      %v693 = vpack.c.b16 %v647, %v646
      %v694 = vpack.c.b16 %v649, %v648
      %v695 = vpack.c.b16 %v651, %v650
      %v696 = vpack.c.b16 %v653, %v652
      %v697 = vpack.c.b16 %v655, %v654
      %v698 = vpack.c.b16 %v657, %v656
      %v699 = vpack.c.b16 %v659, %v658
      %v700 = vpack.c.b16 %v661, %v660
      %v701 = vpack.c.b16 %v663, %v662
      %v702 = vpack.c.b16 %v665, %v664
      %v703 = vpack.c.b16 %v667, %v666
      %v741 = vsel %vm413, %v412, 0
      %v744 = vsel %vm413, %v411, 0
      %746 = vmatprep.subr.bf16.mxu0 0
      %747 = vmatpush1.bf16.msra.mxu0 %v668
      %748 = vmatprep.subr.bf16.mxu0 0
      %749 = vmatpush1.bf16.msra.mxu0 %v669
      %750 = vmatprep.subr.bf16.mxu0 0
      %751 = vmatpush1.bf16.msra.mxu0 %v670
      %752 = vmatprep.subr.bf16.mxu0 0
      %753 = vmatpush1.bf16.msra.mxu0 %v671
      %754 = vmatprep.subr.bf16.mxu0 0
      %755 = vmatpush1.bf16.msra.mxu0 %v672
      %756 = vmatprep.subr.bf16.mxu0 0
      %757 = vmatpush1.bf16.msra.mxu0 %v673
      %758 = vmatprep.subr.bf16.mxu0 0
      %759 = vmatpush1.bf16.msra.mxu0 %v674
      %760 = vmatprep.subr.bf16.mxu0 0
      %761 = vmatpush1.bf16.msra.mxu0 %v675
      %762 = vmatprep.subr.bf16.mxu0 0
      %763 = vmatpush1.bf16.msra.mxu0 %v676
      %764 = vmatprep.subr.bf16.mxu0 0
      %765 = vmatpush1.bf16.msra.mxu0 %v677
      %766 = vmatprep.subr.bf16.mxu0 0
      %767 = vmatpush1.bf16.msra.mxu0 %v678
      %768 = vmatprep.subr.bf16.mxu0 0
      %769 = vmatpush1.bf16.msra.mxu0 %v679
      %770 = vmatprep.subr.bf16.mxu0 0
      %771 = vmatpush1.bf16.msra.mxu0 %v680
      %772 = vmatprep.subr.bf16.mxu0 0
      %773 = vmatpush1.bf16.msra.mxu0 %v681
      %774 = vmatprep.subr.bf16.mxu0 0
      %775 = vmatpush1.bf16.msra.mxu0 %v682
      %776 = vmatprep.subr.bf16.mxu0 0
      %777 = vmatpush1.bf16.msra.mxu0 %v683
      %778 = vmatprep.mubr.bf16.mxu0 %v423
      %779 = vmatmul.mubr.bf16.gmra.mrb[0].mxu0 %v415
      %v780 = vpop.f32.mrb[0].mxu0
      %v781 = vadd.f32 %v522, %v780
      %v782 = vpop.f32.mrb[0].mxu0
      %v783 = vpop.f32.mrb[0].mxu0
      %v784 = vadd.f32 %v522, %v783
      %v785 = vpop.f32.mrb[0].mxu0
      %786 = vmatprep.mubr.bf16.mxu0 %v427
      %787 = vmatmul.mubr.bf16.gmra.mrb[0].mxu0 %v419
      %v788 = vpop.f32.mrb[0].mxu0
      %v789 = vadd.f32 %v522, %v788
      %v790 = vpop.f32.mrb[0].mxu0
      %v791 = vpop.f32.mrb[0].mxu0
      %v792 = vpop.f32.mrb[0].mxu0
      %793 = vdwg.mxu0
      %794 = vmatprep.subr.bf16.mxu0 0
      %795 = vmatpush1.bf16.msra.mxu0 %v684
      %796 = vmatprep.subr.bf16.mxu0 0
      %797 = vmatpush1.bf16.msra.mxu0 %v685
      %798 = vmatprep.subr.bf16.mxu0 0
      %799 = vmatpush1.bf16.msra.mxu0 %v686
      %800 = vmatprep.subr.bf16.mxu0 0
      %801 = vmatpush1.bf16.msra.mxu0 %v687
      %802 = vmatprep.subr.bf16.mxu0 0
      %803 = vmatpush1.bf16.msra.mxu0 %v688
      %804 = vmatprep.subr.bf16.mxu0 0
      %805 = vmatpush1.bf16.msra.mxu0 %v689
      %806 = vmatprep.subr.bf16.mxu0 0
      %807 = vmatpush1.bf16.msra.mxu0 %v690
      %808 = vmatprep.subr.bf16.mxu0 0
      %809 = vmatpush1.bf16.msra.mxu0 %v691
      %810 = vmatprep.subr.bf16.mxu0 0
      %811 = vmatpush1.bf16.msra.mxu0 %v692
      %812 = vmatprep.subr.bf16.mxu0 0
      %813 = vmatpush1.bf16.msra.mxu0 %v693
      %814 = vmatprep.subr.bf16.mxu0 0
      %815 = vmatpush1.bf16.msra.mxu0 %v694
      %816 = vmatprep.subr.bf16.mxu0 0
      %817 = vmatpush1.bf16.msra.mxu0 %v695
      %818 = vmatprep.subr.bf16.mxu0 0
      %819 = vmatpush1.bf16.msra.mxu0 %v696
      %820 = vmatprep.subr.bf16.mxu0 0
      %821 = vmatpush1.bf16.msra.mxu0 %v697
      %822 = vmatprep.subr.bf16.mxu0 0
      %823 = vmatpush1.bf16.msra.mxu0 %v698
      %824 = vmatprep.subr.bf16.mxu0 0
      %825 = vmatpush1.bf16.msra.mxu0 %v699
      %826 = vmatprep.mubr.bf16.mxu0 %v439
      %827 = vmatmul.mubr.bf16.gmra.mrb[0].mxu0 %v431
      %v828 = vpop.f32.mrb[0].mxu0
      %v829 = vadd.f32 %v781, %v828
      %v830 = vpop.f32.mrb[0].mxu0
      %v831 = vpop.f32.mrb[0].mxu0
      %v832 = vadd.f32 %v784, %v831
      %v833 = vpop.f32.mrb[0].mxu0
      %834 = vmatprep.mubr.bf16.mxu0 %v443
      %835 = vmatmul.mubr.bf16.gmra.mrb[0].mxu0 %v435
      %v836 = vpop.f32.mrb[0].mxu0
      %v837 = vadd.f32 %v789, %v836
      %v838 = vpop.f32.mrb[0].mxu0
      %v839 = vpop.f32.mrb[0].mxu0
      %v840 = vpop.f32.mrb[0].mxu0
      %841 = vdwg.mxu0
      %842 = vmatprep.subr.bf16.mxu0 0
      %843 = vmatpush1.bf16.msra.mxu0 %v700
      %844 = vmatprep.subr.bf16.mxu0 0
      %845 = vmatpush1.bf16.msra.mxu0 %v701
      %846 = vmatprep.subr.bf16.mxu0 0
      %847 = vmatpush1.bf16.msra.mxu0 %v702
      %848 = vmatprep.subr.bf16.mxu0 0
      %849 = vmatpush1.bf16.msra.mxu0 %v703
      %850 = vmatprep.subr.bf16.mxu0 0
      %851 = vmatpush1.bf16.msra.mxu0 0
      %852 = vmatprep.subr.bf16.mxu0 0
      %853 = vmatpush1.bf16.msra.mxu0 0
      %854 = vmatprep.subr.bf16.mxu0 0
      %855 = vmatpush1.bf16.msra.mxu0 0
      %856 = vmatprep.subr.bf16.mxu0 0
      %857 = vmatpush1.bf16.msra.mxu0 0
      %858 = vmatprep.subr.bf16.mxu0 0
      %859 = vmatpush1.bf16.msra.mxu0 0
      %860 = vmatprep.subr.bf16.mxu0 0
      %861 = vmatpush1.bf16.msra.mxu0 0
      %862 = vmatprep.subr.bf16.mxu0 0
      %863 = vmatpush1.bf16.msra.mxu0 0
      %864 = vmatprep.subr.bf16.mxu0 0
      %865 = vmatpush1.bf16.msra.mxu0 0
      %866 = vmatprep.subr.bf16.mxu0 0
      %867 = vmatpush1.bf16.msra.mxu0 0
      %868 = vmatprep.subr.bf16.mxu0 0
      %869 = vmatpush1.bf16.msra.mxu0 0
      %870 = vmatprep.subr.bf16.mxu0 0
      %871 = vmatpush1.bf16.msra.mxu0 0
      %872 = vmatprep.subr.bf16.mxu0 0
      %873 = vmatpush1.bf16.msra.mxu0 0
      %874 = vmatprep.mubr.bf16.mxu0 0
      %875 = vmatmul.mubr.bf16.gmra.mrb[0].mxu0 %v741
      %v876 = vpop.f32.mrb[0].mxu0
      %v877 = vadd.f32 %v829, %v876
      %v878 = vpop.f32.mrb[0].mxu0
      %v879 = vpop.f32.mrb[0].mxu0
      %v880 = vadd.f32 %v832, %v879
      %v881 = vpop.f32.mrb[0].mxu0
      %882 = vmatprep.mubr.bf16.mxu0 0
      %883 = vmatmul.mubr.bf16.gmra.mrb[0].mxu0 %v744
      %v884 = vpop.f32.mrb[0].mxu0
      %v885 = vadd.f32 %v837, %v884
      %v886 = vpop.f32.mrb[0].mxu0
      %v887 = vpop.f32.mrb[0].mxu0
      %v888 = vpop.f32.mrb[0].mxu0
      %889 = vdwg.mxu0
      %v890 = vmax.f32 %v877, 0.0
      %v891 = vmax.f32 %v880, 0.0
      %v892 = vmax.f32 %v885, 0.0
      %v893 = vsel %vm278, 1, 0
      %v894 = vsel %vm279, 1, 0
      %v895 = vsel %vm280, 1, 0
      %vm896 = vcmp.eq.s32.totalorder %v893, 1
      %vm897 = vcmp.eq.s32.totalorder %v894, 1
      %vm898 = vcmp.eq.s32.totalorder %v895, 1
      %v899 = vsel %vm896, %v890, 0.0
      %v900 = vsel %vm897, %v891, 0.0
      %v901 = vsel %vm898, %v892, 0.0
      %v902 = vpack.c.bf16 %v900, %v899
      %v903 = vpack.c.bf16 %v901, %v901
      %vm904 = vcmask 519168
      %vm905 = vsmask.f32 3328
      %vm906 = vmand %vm904, %vm905
      %v907 = vld [vmem:[#allocation2] sm:$0xf]
      %v908 = vsel %vm906, 0, %v907
      %909 = vst [vmem:[#allocation2] sm:$0xf] %v908
      %v912 = vunpack.c.l.b16 %v902
      %v913 = vunpack.c.h.b16 %v902
      %v914 = vunpack.c.l.b16 %v903
      %v915 = vpack.c.b16 %v912, %v912
      %v916 = vpack.c.b16 %v913, %v913
      %v917 = vpack.c.b16 %v914, %v914
      %vm918 = vsmask.f32 7440
      %vm919 = vmor %vm905, %vm918
      %v921 = vshll.u32 %v915, 16
      %v923 = vrot.slane %v921, 5
      %v924 = vshrl.u32 %v915, 16
      %v926 = vrot.slane %v924, 4
      %v927 = vor.u32 %v926, %v923
      %v928 = vrot.slane %v927, 4
      %v930 = vshll.u32 %v916, 16
      %v932 = vrot.slane %v930, 5
      %v933 = vsel %vm919, %v928, %v932
      %v934 = vshrl.u32 %v916, 16
      %v936 = vrot.slane %v934, 4
      %v937 = vor.u32 %v936, %v932
      %v938 = vrot.slane %v937, 4
      %v940 = vshll.u32 %v917, 16
      %v942 = vrot.slane %v940, 5
      %v943 = vsel %vm919, %v938, %v942
      %v944 = vshrl.u32 %v917, 16
      %v946 = vrot.slane %v944, 4
      %v947 = vor.u32 %v946, %v942
      %v948 = vrot.slane %v947, 4
      %vm953 = vcmask 519171
      %vm954 = vsmask.f32 7950
      %vm955 = vmand %vm953, %vm954
      %v956 = vld [vmem:[#allocation2] sm:$0x8]
      %v957 = vsel %vm955, %v923, %v956
      %958 = vst [vmem:[#allocation2] sm:$0x8] %v957
      %vm959 = vcmask 519168
      %960 = vst.msk [vmem:[#allocation2 + $0x4] sm:$0xf] %vm959, %v933
      %961 = vst.msk [vmem:[#allocation2 + $0x8] sm:$0xf] %vm959, %v943
      %v962 = vld [vmem:[#allocation2 + $0xc] sm:$0xf]
      %v963 = vsel %vm906, %v948, %v962
      %964 = vst [vmem:[#allocation2 + $0xc] sm:$0xf] %v963
      %v965 = vld [vmem:[#allocation2 + $0xc] sm:$0x8]
      %v966 = vsel %vm955, 0, %v965
      %967 = vst [vmem:[#allocation2 + $0xc] sm:$0x8] %v966
      %968 = vst.msk [vmem:[#allocation2 + $0x10] sm:$0xf] %vm959, 0
      %vm969 = vcmask 517120
      %970 = vst.msk [vmem:[#allocation2 + $0x14] sm:$0x3] %vm969, 0
      %v971 = vld [vmem:[%s219] sm:$0x8]
      %v972 = vld [vmem:[%s219 + $0x4] sm:$0xf]
      %v973 = vld [vmem:[%s219 + $0x8] sm:$0xf]
      %v974 = vld [vmem:[%s219 + $0xc] sm:$0xf]
      %v975 = vld [vmem:[#allocation2] sm:$0xf]
      %v976 = vld [vmem:[#allocation2 + $0x4] sm:$0xf]
      %v977 = vld [vmem:[#allocation2 + $0x8] sm:$0xf]
      %v978 = vld [vmem:[#allocation2 + $0xc] sm:$0x1]
      %v979 = vld [vmem:[#allocation2] sm:$0xe]
      %v980 = vld [vmem:[#allocation2] sm:$0x8]
      %v981 = vld [vmem:[#allocation2 + $0xc] sm:$0x7]
      %v982 = vld [vmem:[#allocation2 + $0xc] sm:$0xf]
      %v983 = vld [vmem:[#allocation2 + $0x4] sm:$0xc]
      %v984 = vld [vmem:[#allocation2 + $0x10] sm:$0x3]
      %v985 = vld [vmem:[#allocation2 + $0x10] sm:$0x7]
      %v986 = vld [vmem:[#allocation2 + $0x4] sm:$0x8]
      %v990 = vunpack.c.l.b16 %v975
      %v991 = vunpack.c.l.b16 %v976
      %v992 = vunpack.c.l.b16 %v977
      %v993 = vpack.c.b16 %v991, %v990
      %v994 = vpack.c.b16 %v992, %v992
      %v996 = vunpack.c.l.b16 %v978
      %v997 = vpack.c.b16 %v996, %v992
      %v999 = vshrl.u32 %v993, 16
      %v1001 = vshll.u32 %v993, 16
      %v1003 = vrot.slane %v1001, 1
      %v1004 = vor.u32 %v999, %v1003
      %v1006 = vshll.u32 %v997, 16
      %v1008 = vrot.slane %v1006, 1
      %v1009 = vsel %vm304, %v1004, %v1008
      %v1010 = vshrl.u32 %v997, 16
      %v1012 = vor.u32 %v1010, %v1008
      %1013 = vrot.lane.b32.xlu0 %v1009, 64
      %v1014 = vpop.permute.xlu0 %1013
      %1015 = vrot.lane.b32.xlu0 %v1012, 64
      %v1016 = vpop.permute.xlu0 %1015
      %v1018 = vunpack.c.l.b16 %v979
      %v1019 = vpack.c.b16 %v991, %v1018
      %v1020 = vrot.slane %v1019, 1
      %v1021 = vrot.slane %v997, 1
      %v1022 = vsel %vm327, %v1020, %v1021
      %v1025 = vunpack.c.l.b16 %v980
      %v1026 = vunpack.c.l.b16 %v981
      %v1027 = vpack.c.b16 %v991, %v1025
      %v1028 = vpack.c.b16 %v1026, %v992
      %v1029 = vrot.slane %v1027, 3
      %v1030 = vrot.slane %v1028, 3
      %v1031 = vsel %vm337, %v1029, %v1030
      %1032 = vrot.lane.b32.xlu0 %v1031, 64
      %v1033 = vpop.permute.xlu0 %1032
      %1034 = vrot.lane.b32.xlu0 %v1030, 64
      %v1035 = vpop.permute.xlu0 %1034
      %v1037 = vunpack.c.l.b16 %v982
      %v1038 = vpack.c.b16 %v1037, %v992
      %v1040 = vshrl.u32 %v1027, 16
      %v1042 = vrot.slane %v1040, 3
      %v1043 = vshll.u32 %v1027, 16
      %v1045 = vrot.slane %v1043, 4
      %v1046 = vor.u32 %v1042, %v1045
      %v1048 = vshrl.u32 %v1038, 16
      %v1050 = vrot.slane %v1048, 3
      %v1051 = vshll.u32 %v1038, 16
      %v1053 = vrot.slane %v1051, 4
      %v1054 = vor.u32 %v1050, %v1053
      %v1055 = vsel %vm348, %v1046, %v1054
      %v1056 = vpack.c.b16 %v992, %v991
      %v1057 = vpack.c.b16 %v1037, %v1037
      %1058 = vrot.lane.b32.xlu0 %v1056, 64
      %v1059 = vpop.permute.xlu0 %1058
      %1060 = vrot.lane.b32.xlu0 %v1057, 64
      %v1061 = vpop.permute.xlu0 %1060
      %v1064 = vunpack.c.l.b16 %v983
      %v1065 = vunpack.c.l.b16 %v984
      %v1066 = vpack.c.b16 %v992, %v1064
      %v1067 = vpack.c.b16 %v1065, %v1037
      %v1068 = vrot.slane %v1066, 2
      %v1069 = vrot.slane %v1067, 2
      %v1070 = vsel %vm378, %v1068, %v1069
      %v1072 = vunpack.c.l.b16 %v985
      %v1073 = vpack.c.b16 %v1072, %v1037
      %v1075 = vshrl.u32 %v1066, 16
      %v1077 = vrot.slane %v1075, 2
      %v1078 = vshll.u32 %v1066, 16
      %v1080 = vrot.slane %v1078, 3
      %v1081 = vor.u32 %v1077, %v1080
      %v1083 = vshrl.u32 %v1073, 16
      %v1085 = vrot.slane %v1083, 2
      %v1086 = vshll.u32 %v1073, 16
      %v1088 = vrot.slane %v1086, 3
      %v1089 = vor.u32 %v1085, %v1088
      %v1090 = vsel %vm385, %v1081, %v1089
      %1091 = vrot.lane.b32.xlu0 %v1090, 64
      %v1092 = vpop.permute.xlu0 %1091
      %1093 = vrot.lane.b32.xlu0 %v1089, 64
      %v1094 = vpop.permute.xlu0 %1093
      %v1096 = vunpack.c.l.b16 %v986
      %v1097 = vpack.c.b16 %v992, %v1096
      %v1098 = vrot.slane %v1097, 3
      %v1099 = vrot.slane %v1073, 3
      %v1100 = vsel %vm337, %v1098, %v1099
      %v1102 = vsel %vm413, %v993, %v1014
      %v1106 = vsel %vm413, %v994, %v1016
      %v1110 = vsel %vm413, %v1022, %v1033
      %v1114 = vsel %vm413, %v1021, %v1035
      %v1118 = vsel %vm413, %v1055, %v1059
      %v1122 = vsel %vm413, %v1054, %v1061
      %v1126 = vsel %vm413, %v1070, %v1092
      %v1130 = vsel %vm413, %v1069, %v1094
      %v1132 = vld [vmem:[%s3] sm:$0xf]
      %v1133 = vld [vmem:[%s3 + $0x4] sm:$0xf]
      %v1134 = vld [vmem:[%s3 + $0x8] sm:$0xf]
      %v1135 = vld [vmem:[%s3 + $0xc] sm:$0xf]
      %v1136 = vld [vmem:[%s3 + $0x10] sm:$0xf]
      %v1137 = vld [vmem:[%s3 + $0x14] sm:$0xf]
      %v1138 = vld [vmem:[%s3 + $0x18] sm:$0xf]
      %v1139 = vld [vmem:[%s3 + $0x1c] sm:$0xf]
      %v1140 = vld [vmem:[%s3 + $0x20] sm:$0xf]
      %v1141 = vld [vmem:[%s3 + $0x24] sm:$0xf]
      %v1142 = vld [vmem:[%s3 + $0x28] sm:$0xf]
      %v1143 = vld [vmem:[%s3 + $0x2c] sm:$0xf]
      %v1144 = vld [vmem:[%s3 + $0x30] sm:$0xf]
      %v1145 = vld [vmem:[%s3 + $0x34] sm:$0xf]
      %v1146 = vld [vmem:[%s3 + $0x38] sm:$0xf]
      %v1147 = vld [vmem:[%s3 + $0x3c] sm:$0xf]
      %v1148 = vld [vmem:[%s3 + $0x40] sm:$0xf]
      %v1149 = vld [vmem:[%s3 + $0x44] sm:$0xf]
      %v1150 = vld [vmem:[%s3 + $0x48] sm:$0xf]
      %v1151 = vld [vmem:[%s3 + $0x4c] sm:$0xf]
      %v1152 = vld [vmem:[%s3 + $0x50] sm:$0xf]
      %v1153 = vld [vmem:[%s3 + $0x54] sm:$0xf]
      %v1154 = vld [vmem:[%s3 + $0x58] sm:$0xf]
      %v1155 = vld [vmem:[%s3 + $0x5c] sm:$0xf]
      %v1156 = vld [vmem:[%s3 + $0x60] sm:$0xf]
      %v1157 = vld [vmem:[%s3 + $0x64] sm:$0xf]
      %v1158 = vld [vmem:[%s3 + $0x68] sm:$0xf]
      %v1159 = vld [vmem:[%s3 + $0x6c] sm:$0xf]
      %v1160 = vld [vmem:[%s3 + $0x70] sm:$0xf]
      %v1161 = vld [vmem:[%s3 + $0x74] sm:$0xf]
      %v1162 = vld [vmem:[%s3 + $0x78] sm:$0xf]
      %v1163 = vld [vmem:[%s3 + $0x7c] sm:$0xf]
      %v1164 = vld [vmem:[%s3 + $0x80] sm:$0xf]
      %v1165 = vld [vmem:[%s3 + $0x84] sm:$0xf]
      %v1166 = vld [vmem:[%s3 + $0x88] sm:$0xf]
      %v1167 = vld [vmem:[%s3 + $0x8c] sm:$0xf]
      %v1168 = vld [vmem:[%s3 + $0x90] sm:$0xf]
      %v1169 = vld [vmem:[%s3 + $0x94] sm:$0xf]
      %v1170 = vld [vmem:[%s3 + $0x98] sm:$0xf]
      %v1171 = vld [vmem:[%s3 + $0x9c] sm:$0xf]
      %v1172 = vld [vmem:[%s3 + $0xa0] sm:$0xf]
      %v1173 = vld [vmem:[%s3 + $0xa4] sm:$0xf]
      %v1174 = vld [vmem:[%s3 + $0xa8] sm:$0xf]
      %v1175 = vld [vmem:[%s3 + $0xac] sm:$0xf]
      %v1176 = vld [vmem:[%s3 + $0xb0] sm:$0xf]
      %v1177 = vld [vmem:[%s3 + $0xb4] sm:$0xf]
      %v1178 = vld [vmem:[%s3 + $0xb8] sm:$0xf]
      %v1179 = vld [vmem:[%s3 + $0xbc] sm:$0xf]
      %v1180 = vld [vmem:[%s3 + $0xc0] sm:$0xf]
      %v1181 = vld [vmem:[%s3 + $0xc4] sm:$0xf]
      %v1182 = vld [vmem:[%s3 + $0xc8] sm:$0xf]
      %v1183 = vld [vmem:[%s3 + $0xcc] sm:$0xf]
      %v1184 = vld [vmem:[%s3 + $0xd0] sm:$0xf]
      %v1185 = vld [vmem:[%s3 + $0xd4] sm:$0xf]
      %v1186 = vld [vmem:[%s3 + $0xd8] sm:$0xf]
      %v1187 = vld [vmem:[%s3 + $0xdc] sm:$0xf]
      %v1188 = vld [vmem:[%s3 + $0xe0] sm:$0xf]
      %v1189 = vld [vmem:[%s3 + $0xe4] sm:$0xf]
      %v1190 = vld [vmem:[%s3 + $0xe8] sm:$0xf]
      %v1191 = vld [vmem:[%s3 + $0xec] sm:$0xf]
      %v1192 = vld [vmem:[%s3 + $0xf0] sm:$0xf]
      %v1193 = vld [vmem:[%s3 + $0xf4] sm:$0xf]
      %v1194 = vld [vmem:[%s3 + $0xf8] sm:$0xf]
      %v1195 = vld [vmem:[%s3 + $0xfc] sm:$0xf]
      %v1196 = vld [vmem:[%s3 + $0x100] sm:$0xf]
      %v1197 = vld [vmem:[%s3 + $0x104] sm:$0xf]
      %v1198 = vld [vmem:[%s3 + $0x108] sm:$0xf]
      %v1199 = vld [vmem:[%s3 + $0x10c] sm:$0xf]
      %v1200 = vld [vmem:[%s3 + $0x110] sm:$0xf]
      %v1201 = vld [vmem:[%s3 + $0x114] sm:$0xf]
      %v1202 = vld [vmem:[%s3 + $0x118] sm:$0xf]
      %v1203 = vld [vmem:[%s3 + $0x11c] sm:$0xf]
      %v1204 = vld [vmem:[%s4] sm:$0x1]
      %v1206 = vlaneseq
      %v1207 = vshrl.u32 %v1206, 7
      %v1208 = vsub.s32 0, %v1207
      %v1209 = vrot.slane %v1204, %v1208
      %v1283 = vunpack.c.l.b16 %v1132
      %v1284 = vunpack.c.l.b16 %v1133
      %v1285 = vunpack.c.l.b16 %v1134
      %v1286 = vunpack.c.l.b16 %v1135
      %v1287 = vunpack.c.l.b16 %v1136
      %v1288 = vunpack.c.l.b16 %v1137
      %v1289 = vunpack.c.l.b16 %v1138
      %v1290 = vunpack.c.l.b16 %v1139
      %v1291 = vunpack.c.l.b16 %v1140
      %v1292 = vunpack.c.l.b16 %v1141
      %v1293 = vunpack.c.l.b16 %v1142
      %v1294 = vunpack.c.l.b16 %v1143
      %v1295 = vunpack.c.l.b16 %v1144
      %v1296 = vunpack.c.l.b16 %v1145
      %v1297 = vunpack.c.l.b16 %v1146
      %v1298 = vunpack.c.l.b16 %v1147
      %v1299 = vunpack.c.l.b16 %v1148
      %v1300 = vunpack.c.l.b16 %v1149
      %v1301 = vunpack.c.l.b16 %v1150
      %v1302 = vunpack.c.l.b16 %v1151
      %v1303 = vunpack.c.l.b16 %v1152
      %v1304 = vunpack.c.l.b16 %v1153
      %v1305 = vunpack.c.l.b16 %v1154
      %v1306 = vunpack.c.l.b16 %v1155
      %v1307 = vunpack.c.l.b16 %v1156
      %v1308 = vunpack.c.l.b16 %v1157
      %v1309 = vunpack.c.l.b16 %v1158
      %v1310 = vunpack.c.l.b16 %v1159
      %v1311 = vunpack.c.l.b16 %v1160
      %v1312 = vunpack.c.l.b16 %v1161
      %v1313 = vunpack.c.l.b16 %v1162
      %v1314 = vunpack.c.l.b16 %v1163
      %v1315 = vunpack.c.l.b16 %v1164
      %v1316 = vunpack.c.l.b16 %v1165
      %v1317 = vunpack.c.l.b16 %v1166
      %v1318 = vunpack.c.l.b16 %v1167
      %v1319 = vunpack.c.l.b16 %v1168
      %v1320 = vunpack.c.l.b16 %v1169
      %v1321 = vunpack.c.l.b16 %v1170
      %v1322 = vunpack.c.l.b16 %v1171
      %v1323 = vunpack.c.l.b16 %v1172
      %v1324 = vunpack.c.l.b16 %v1173
      %v1325 = vunpack.c.l.b16 %v1174
      %v1326 = vunpack.c.l.b16 %v1175
      %v1327 = vunpack.c.l.b16 %v1176
      %v1328 = vunpack.c.l.b16 %v1177
      %v1329 = vunpack.c.l.b16 %v1178
      %v1330 = vunpack.c.l.b16 %v1179
      %v1331 = vunpack.c.l.b16 %v1180
      %v1332 = vunpack.c.l.b16 %v1181
      %v1333 = vunpack.c.l.b16 %v1182
      %v1334 = vunpack.c.l.b16 %v1183
      %v1335 = vunpack.c.l.b16 %v1184
      %v1336 = vunpack.c.l.b16 %v1185
      %v1337 = vunpack.c.l.b16 %v1186
      %v1338 = vunpack.c.l.b16 %v1187
      %v1339 = vunpack.c.l.b16 %v1188
      %v1340 = vunpack.c.l.b16 %v1189
      %v1341 = vunpack.c.l.b16 %v1190
      %v1342 = vunpack.c.l.b16 %v1191
      %v1343 = vunpack.c.l.b16 %v1192
      %v1344 = vunpack.c.l.b16 %v1193
      %v1345 = vunpack.c.l.b16 %v1194
      %v1346 = vunpack.c.l.b16 %v1195
      %v1347 = vunpack.c.l.b16 %v1196
      %v1348 = vunpack.c.l.b16 %v1197
      %v1349 = vunpack.c.l.b16 %v1198
      %v1350 = vunpack.c.l.b16 %v1199
      %v1351 = vunpack.c.l.b16 %v1200
      %v1352 = vunpack.c.l.b16 %v1201
      %v1353 = vunpack.c.l.b16 %v1202
      %v1354 = vunpack.c.l.b16 %v1203
      %v1355 = vpack.c.b16 %v1284, %v1283
      %v1356 = vpack.c.b16 %v1286, %v1285
      %v1357 = vpack.c.b16 %v1288, %v1287
      %v1358 = vpack.c.b16 %v1290, %v1289
      %v1359 = vpack.c.b16 %v1292, %v1291
      %v1360 = vpack.c.b16 %v1294, %v1293
      %v1361 = vpack.c.b16 %v1296, %v1295
      %v1362 = vpack.c.b16 %v1298, %v1297
      %v1363 = vpack.c.b16 %v1300, %v1299
      %v1364 = vpack.c.b16 %v1302, %v1301
      %v1365 = vpack.c.b16 %v1304, %v1303
      %v1366 = vpack.c.b16 %v1306, %v1305
      %v1367 = vpack.c.b16 %v1308, %v1307
      %v1368 = vpack.c.b16 %v1310, %v1309
      %v1369 = vpack.c.b16 %v1312, %v1311
      %v1370 = vpack.c.b16 %v1314, %v1313
      %v1371 = vpack.c.b16 %v1316, %v1315
      %v1372 = vpack.c.b16 %v1318, %v1317
      %v1373 = vpack.c.b16 %v1320, %v1319
      %v1374 = vpack.c.b16 %v1322, %v1321
      %v1375 = vpack.c.b16 %v1324, %v1323
      %v1376 = vpack.c.b16 %v1326, %v1325
      %v1377 = vpack.c.b16 %v1328, %v1327
      %v1378 = vpack.c.b16 %v1330, %v1329
      %v1379 = vpack.c.b16 %v1332, %v1331
      %v1380 = vpack.c.b16 %v1334, %v1333
      %v1381 = vpack.c.b16 %v1336, %v1335
      %v1382 = vpack.c.b16 %v1338, %v1337
      %v1383 = vpack.c.b16 %v1340, %v1339
      %v1384 = vpack.c.b16 %v1342, %v1341
      %v1385 = vpack.c.b16 %v1344, %v1343
      %v1386 = vpack.c.b16 %v1346, %v1345
      %v1387 = vpack.c.b16 %v1348, %v1347
      %v1388 = vpack.c.b16 %v1350, %v1349
      %v1389 = vpack.c.b16 %v1352, %v1351
      %v1390 = vpack.c.b16 %v1354, %v1353
      %v1428 = vsel %vm413, %v1100, 0
      %v1431 = vsel %vm413, %v1099, 0
      %1433 = vmatprep.subr.bf16.mxu0 0
      %1434 = vmatpush1.bf16.msra.mxu0 %v1355
      %1435 = vmatprep.subr.bf16.mxu0 0
      %1436 = vmatpush1.bf16.msra.mxu0 %v1356
      %1437 = vmatprep.subr.bf16.mxu0 0
      %1438 = vmatpush1.bf16.msra.mxu0 %v1357
      %1439 = vmatprep.subr.bf16.mxu0 0
      %1440 = vmatpush1.bf16.msra.mxu0 %v1358
      %1441 = vmatprep.subr.bf16.mxu0 0
      %1442 = vmatpush1.bf16.msra.mxu0 %v1359
      %1443 = vmatprep.subr.bf16.mxu0 0
      %1444 = vmatpush1.bf16.msra.mxu0 %v1360
      %1445 = vmatprep.subr.bf16.mxu0 0
      %1446 = vmatpush1.bf16.msra.mxu0 %v1361
      %1447 = vmatprep.subr.bf16.mxu0 0
      %1448 = vmatpush1.bf16.msra.mxu0 %v1362
      %1449 = vmatprep.subr.bf16.mxu0 0
      %1450 = vmatpush1.bf16.msra.mxu0 %v1363
      %1451 = vmatprep.subr.bf16.mxu0 0
      %1452 = vmatpush1.bf16.msra.mxu0 %v1364
      %1453 = vmatprep.subr.bf16.mxu0 0
      %1454 = vmatpush1.bf16.msra.mxu0 %v1365
      %1455 = vmatprep.subr.bf16.mxu0 0
      %1456 = vmatpush1.bf16.msra.mxu0 %v1366
      %1457 = vmatprep.subr.bf16.mxu0 0
      %1458 = vmatpush1.bf16.msra.mxu0 %v1367
      %1459 = vmatprep.subr.bf16.mxu0 0
      %1460 = vmatpush1.bf16.msra.mxu0 %v1368
      %1461 = vmatprep.subr.bf16.mxu0 0
      %1462 = vmatpush1.bf16.msra.mxu0 %v1369
      %1463 = vmatprep.subr.bf16.mxu0 0
      %1464 = vmatpush1.bf16.msra.mxu0 %v1370
      %1465 = vmatprep.mubr.bf16.mxu0 %v1110
      %1466 = vmatmul.mubr.bf16.gmra.mrb[0].mxu0 %v1102
      %v1467 = vpop.f32.mrb[0].mxu0
      %v1468 = vadd.f32 %v1209, %v1467
      %v1469 = vpop.f32.mrb[0].mxu0
      %v1470 = vpop.f32.mrb[0].mxu0
      %v1471 = vadd.f32 %v1209, %v1470
      %v1472 = vpop.f32.mrb[0].mxu0
      %1473 = vmatprep.mubr.bf16.mxu0 %v1114
      %1474 = vmatmul.mubr.bf16.gmra.mrb[0].mxu0 %v1106
      %v1475 = vpop.f32.mrb[0].mxu0
      %v1476 = vadd.f32 %v1209, %v1475
      %v1477 = vpop.f32.mrb[0].mxu0
      %v1478 = vpop.f32.mrb[0].mxu0
      %v1479 = vpop.f32.mrb[0].mxu0
      %1480 = vdwg.mxu0
      %1481 = vmatprep.subr.bf16.mxu0 0
      %1482 = vmatpush1.bf16.msra.mxu0 %v1371
      %1483 = vmatprep.subr.bf16.mxu0 0
      %1484 = vmatpush1.bf16.msra.mxu0 %v1372
      %1485 = vmatprep.subr.bf16.mxu0 0
      %1486 = vmatpush1.bf16.msra.mxu0 %v1373
      %1487 = vmatprep.subr.bf16.mxu0 0
      %1488 = vmatpush1.bf16.msra.mxu0 %v1374
      %1489 = vmatprep.subr.bf16.mxu0 0
      %1490 = vmatpush1.bf16.msra.mxu0 %v1375
      %1491 = vmatprep.subr.bf16.mxu0 0
      %1492 = vmatpush1.bf16.msra.mxu0 %v1376
      %1493 = vmatprep.subr.bf16.mxu0 0
      %1494 = vmatpush1.bf16.msra.mxu0 %v1377
      %1495 = vmatprep.subr.bf16.mxu0 0
      %1496 = vmatpush1.bf16.msra.mxu0 %v1378
      %1497 = vmatprep.subr.bf16.mxu0 0
      %1498 = vmatpush1.bf16.msra.mxu0 %v1379
      %1499 = vmatprep.subr.bf16.mxu0 0
      %1500 = vmatpush1.bf16.msra.mxu0 %v1380
      %1501 = vmatprep.subr.bf16.mxu0 0
      %1502 = vmatpush1.bf16.msra.mxu0 %v1381
      %1503 = vmatprep.subr.bf16.mxu0 0
      %1504 = vmatpush1.bf16.msra.mxu0 %v1382
      %1505 = vmatprep.subr.bf16.mxu0 0
      %1506 = vmatpush1.bf16.msra.mxu0 %v1383
      %1507 = vmatprep.subr.bf16.mxu0 0
      %1508 = vmatpush1.bf16.msra.mxu0 %v1384
      %1509 = vmatprep.subr.bf16.mxu0 0
      %1510 = vmatpush1.bf16.msra.mxu0 %v1385
      %1511 = vmatprep.subr.bf16.mxu0 0
      %1512 = vmatpush1.bf16.msra.mxu0 %v1386
      %1513 = vmatprep.mubr.bf16.mxu0 %v1126
      %1514 = vmatmul.mubr.bf16.gmra.mrb[0].mxu0 %v1118
      %v1515 = vpop.f32.mrb[0].mxu0
      %v1516 = vadd.f32 %v1468, %v1515
      %v1517 = vpop.f32.mrb[0].mxu0
      %v1518 = vpop.f32.mrb[0].mxu0
      %v1519 = vadd.f32 %v1471, %v1518
      %v1520 = vpop.f32.mrb[0].mxu0
      %1521 = vmatprep.mubr.bf16.mxu0 %v1130
      %1522 = vmatmul.mubr.bf16.gmra.mrb[0].mxu0 %v1122
      %v1523 = vpop.f32.mrb[0].mxu0
      %v1524 = vadd.f32 %v1476, %v1523
      %v1525 = vpop.f32.mrb[0].mxu0
      %v1526 = vpop.f32.mrb[0].mxu0
      %v1527 = vpop.f32.mrb[0].mxu0
      %1528 = vdwg.mxu0
      %1529 = vmatprep.subr.bf16.mxu0 0
      %1530 = vmatpush1.bf16.msra.mxu0 %v1387
      %1531 = vmatprep.subr.bf16.mxu0 0
      %1532 = vmatpush1.bf16.msra.mxu0 %v1388
      %1533 = vmatprep.subr.bf16.mxu0 0
      %1534 = vmatpush1.bf16.msra.mxu0 %v1389
      %1535 = vmatprep.subr.bf16.mxu0 0
      %1536 = vmatpush1.bf16.msra.mxu0 %v1390
      %1537 = vmatprep.subr.bf16.mxu0 0
      %1538 = vmatpush1.bf16.msra.mxu0 0
      %1539 = vmatprep.subr.bf16.mxu0 0
      %1540 = vmatpush1.bf16.msra.mxu0 0
      %1541 = vmatprep.subr.bf16.mxu0 0
      %1542 = vmatpush1.bf16.msra.mxu0 0
      %1543 = vmatprep.subr.bf16.mxu0 0
      %1544 = vmatpush1.bf16.msra.mxu0 0
      %1545 = vmatprep.subr.bf16.mxu0 0
      %1546 = vmatpush1.bf16.msra.mxu0 0
      %1547 = vmatprep.subr.bf16.mxu0 0
      %1548 = vmatpush1.bf16.msra.mxu0 0
      %1549 = vmatprep.subr.bf16.mxu0 0
      %1550 = vmatpush1.bf16.msra.mxu0 0
      %1551 = vmatprep.subr.bf16.mxu0 0
      %1552 = vmatpush1.bf16.msra.mxu0 0
      %1553 = vmatprep.subr.bf16.mxu0 0
      %1554 = vmatpush1.bf16.msra.mxu0 0
      %1555 = vmatprep.subr.bf16.mxu0 0
      %1556 = vmatpush1.bf16.msra.mxu0 0
      %1557 = vmatprep.subr.bf16.mxu0 0
      %1558 = vmatpush1.bf16.msra.mxu0 0
      %1559 = vmatprep.subr.bf16.mxu0 0
      %1560 = vmatpush1.bf16.msra.mxu0 0
      %1561 = vmatprep.mubr.bf16.mxu0 0
      %1562 = vmatmul.mubr.bf16.gmra.mrb[0].mxu0 %v1428
      %v1563 = vpop.f32.mrb[0].mxu0
      %v1564 = vadd.f32 %v1516, %v1563
      %v1565 = vpop.f32.mrb[0].mxu0
      %v1566 = vpop.f32.mrb[0].mxu0
      %v1567 = vadd.f32 %v1519, %v1566
      %v1568 = vpop.f32.mrb[0].mxu0
      %1569 = vmatprep.mubr.bf16.mxu0 0
      %1570 = vmatmul.mubr.bf16.gmra.mrb[0].mxu0 %v1431
      %v1571 = vpop.f32.mrb[0].mxu0
      %v1572 = vadd.f32 %v1524, %v1571
      %v1573 = vpop.f32.mrb[0].mxu0
      %v1574 = vpop.f32.mrb[0].mxu0
      %v1575 = vpop.f32.mrb[0].mxu0
      %1576 = vdwg.mxu0
      %v1577 = vunpack.c.l.bf16 %v971
      %v1578 = vunpack.c.l.bf16 %v972
      %v1579 = vunpack.c.l.bf16 %v973
      %v1580 = vunpack.c.l.bf16 %v974
      %vm1585 = vcmask 1040384
      %v1586 = vrot.slane %v1577, 7
      %v1587 = vrot.slane %v1578, 7
      %v1588 = vsel %vm1585, %v1586, %v1587
      %v1589 = vrot.slane %v1579, 7
      %v1590 = vsel %vm1585, %v1587, %v1589
      %v1591 = vrot.slane %v1580, 7
      %v1592 = vsel %vm1585, %v1589, %v1591
      %v1596 = vadd.f32 %v1564, %v1588
      %v1597 = vadd.f32 %v1567, %v1590
      %v1598 = vadd.f32 %v1572, %v1592
      %v1599 = vmax.f32 %v1596, 0.0
      %v1600 = vmax.f32 %v1597, 0.0
      %v1601 = vmax.f32 %v1598, 0.0
      %v1602 = vsel %vm896, %v1599, 0.0
      %v1603 = vsel %vm897, %v1600, 0.0
      %v1604 = vsel %vm898, %v1601, 0.0
      %v1605 = vpack.c.bf16 %v1603, %v1602
      %v1606 = vpack.c.bf16 %v1604, %v1604
      %v1607 = vld [vmem:[%s224] sm:$0xf]
      %v1608 = vsel %vm906, 0, %v1607
      %1609 = vst [vmem:[%s224] sm:$0xf] %v1608
      %v1612 = vunpack.c.l.b16 %v1605
      %v1613 = vunpack.c.h.b16 %v1605
      %v1614 = vunpack.c.l.b16 %v1606
      %v1615 = vpack.c.b16 %v1612, %v1612
      %v1616 = vpack.c.b16 %v1613, %v1613
      %v1617 = vpack.c.b16 %v1614, %v1614
      %v1619 = vshll.u32 %v1615, 16
      %v1621 = vrot.slane %v1619, 5
      %v1622 = vshrl.u32 %v1615, 16
      %v1624 = vrot.slane %v1622, 4
      %v1625 = vor.u32 %v1624, %v1621
      %v1626 = vrot.slane %v1625, 4
      %v1628 = vshll.u32 %v1616, 16
      %v1630 = vrot.slane %v1628, 5
      %v1631 = vsel %vm919, %v1626, %v1630
      %v1632 = vshrl.u32 %v1616, 16
      %v1634 = vrot.slane %v1632, 4
      %v1635 = vor.u32 %v1634, %v1630
      %v1636 = vrot.slane %v1635, 4
      %v1638 = vshll.u32 %v1617, 16
      %v1640 = vrot.slane %v1638, 5
      %v1641 = vsel %vm919, %v1636, %v1640
      %v1642 = vshrl.u32 %v1617, 16
      %v1644 = vrot.slane %v1642, 4
      %v1645 = vor.u32 %v1644, %v1640
      %v1646 = vrot.slane %v1645, 4
      %v1651 = vld [vmem:[%s224] sm:$0x8]
      %v1652 = vsel %vm955, %v1621, %v1651
      %1653 = vst [vmem:[%s224] sm:$0x8] %v1652
      %1654 = vst.msk [vmem:[%s224 + $0x4] sm:$0xf] %vm959, %v1631
      %1655 = vst.msk [vmem:[%s224 + $0x8] sm:$0xf] %vm959, %v1641
      %v1656 = vld [vmem:[%s224 + $0xc] sm:$0xf]
      %v1657 = vsel %vm906, %v1646, %v1656
      %1658 = vst [vmem:[%s224 + $0xc] sm:$0xf] %v1657
      %v1659 = vld [vmem:[%s224 + $0xc] sm:$0x8]
      %v1660 = vsel %vm955, 0, %v1659
      %1661 = vst [vmem:[%s224 + $0xc] sm:$0x8] %v1660
      %1662 = vst.msk [vmem:[%s224 + $0x10] sm:$0xf] %vm959, 0
      %1663 = vst.msk [vmem:[%s224 + $0x14] sm:$0x3] %vm969, 0
      %p1664 = scmp.lt.s32.totalorder %s16, 1
      %s1665 = scalar_select %p1664, %s16, 1
      %s1666 = smul.addr %s1665, 6
      %s1667 = smul.addr %s1666, 4
      %s1668 = scalar_lea.vmem %s5, %s1667
      // Predicated region
      $region41: #{dist_resnet_forward.6} parent=39 // pred_check
        %p1669 = pneg %p144
      $region42: #{dist_resnet_forward.6} parent=39 // pred_check_branch
        %1671 = sbr.rel (%p1669) target = $region44
      $region43: #{dist_resnet_forward.6} parent=39 // pred_region
        _
      $region44: #{dist_resnet_forward.6} parent=39 // pred_fallthru
        _
    $region40: #{dist_resnet_forward.6} parent=5 // pred_fallthru
      _
    %p1672 = scmp.le.s32.totalorder 2, %s11
    // Predicated region
    $region45: #{dist_resnet_forward.6} parent=5 // pred_check
      %p1673 = pneg %p1672
    $region46: #{dist_resnet_forward.6} parent=5 // pred_check_branch
      %1675 = sbr.rel (%p1673) target = $region48
    $region47: #{dist_resnet_forward.6} parent=5 // pred_region
      %s1676 = ssub.s32 %s11, 2
      // Predicated region
      $region49: #{dist_resnet_forward.6} parent=47 // pred_check
        %p1677 = pneg %p150
      $region50: #{dist_resnet_forward.6} parent=47 // pred_check_branch
        %1679 = sbr.rel (%p1677) target = $region52
      $region51: #{dist_resnet_forward.6} parent=47 // pred_region
        %p1680 = scmp.lt.s32.totalorder %s17, 1
        %s1681 = scalar_select %p1680, %s17, 1
        %s1682 = smul.addr %s1681, 6
        %s1683 = smul.addr %s1682, 4
        %s1684 = scalar_lea.vmem %s5, %s1683
      $region52: #{dist_resnet_forward.6} parent=47 // pred_fallthru
        _
    $region48: #{dist_resnet_forward.6} parent=5 // pred_fallthru
      _
  $region6: #{dist_resnet_forward.6} parent=0 // loop_footer
    %s15 = sadd.s32 1, %s11
  $region7: #{dist_resnet_forward.6} parent=0 // loop_footer_branch
    %10 = sbr.rel target = $region3
  $region8: #{dist_resnet_forward.6} parent=0 // loop_exit
    _

</llo_original>
